<compile_context>
chip_gen: v5e
topology: v5e:2x2
jax: 0.10.0
libtpu: 0.0.40
codegen_flags: <defaults>
</compile_context>

<pallas_src>
import functools

import jax
import jax.numpy as jnp
from jax.experimental import pallas as pl
from jax.experimental.pallas import tpu as pltpu

# Non-center taps of the 3x3 depthwise conv, as (row offset, col offset).
_TAPS = tuple((di, dj) for di in (-1, 0, 1) for dj in (-1, 0, 1)
              if (di, dj) != (0, 0))


def _gelu_exact(x):
    """0.5*x*(1+erf(x/sqrt(2))) with erf from Abramowitz&Stegun 7.1.26.

    |abs err| < 1.5e-7 vs true erf; uses only exp/mul/add/where so it lowers
    cleanly in Mosaic (no dependence on an erf primitive lowering).
    """
    z = x * 0.7071067811865476
    az = jnp.abs(z)
    t = 1.0 / (1.0 + 0.3275911 * az)
    poly = t * (0.254829592 + t * (-0.284496736 + t * (
        1.421413741 + t * (-1.453152027 + t * 1.061405429))))
    erf_abs = 1.0 - poly * jnp.exp(-az * az)
    erf = jnp.where(z < 0.0, -erf_abs, erf_abs)
    return 0.5 * x * (1.0 + erf)


def mixmlp_kernel(masks_ref, x_ref, w1t_ref, b1_ref, wdw_ref, bdw_ref,
                  w2t_ref, b2_ref, o_ref, *, H, W, nb,
                  dw_bf16=False, gelu_approx=False):
    HW = H * W
    masks = masks_ref[...]                       # (8, HW)   boundary masks
    w1t = w1t_ref[...]                           # (hid, cin) MXU dtype
    w2t = w2t_ref[...]                           # (cout, hid) MXU dtype
    wdw = wdw_ref[...]                           # (hid, 9)   f32, tap=kh*3+kw
    b1 = b1_ref[...]                             # (hid, 1)   f32
    bdw = bdw_ref[...]                           # (hid, 1)   f32
    b2 = b2_ref[...]                             # (cout, 1)  f32

    cdt = jnp.bfloat16 if dw_bf16 else jnp.float32
    masks_c = masks.astype(cdt)
    wdw_c = wdw.astype(cdt)

    for n in range(nb):                          # nb is small and static
        x = x_ref[n]                             # (cin, HW)

        # ---- fc1 (1x1 conv): (hid,cin)@(cin,HW) on the MXU, f32 accumulate.
        h = jnp.dot(w1t, x, preferred_element_type=jnp.float32) + b1

        # ---- depthwise 3x3 conv, padding=1, groups=hid.
        # Center tap: no roll, no mask.  Other taps: one XLU roll, one mask
        # mul (precomputed mask also kills the lane-roll wrap-around), one
        # per-channel weight mul, one add.
        hc = h.astype(cdt)
        acc = hc * wdw_c[:, 4:5]
        for idx, (di, dj) in enumerate(_TAPS):
            t = (di + 1) * 3 + (dj + 1)
            off = di * W + dj                    # source = dest + off
            s = pltpu.roll(hc, shift=(-off) % HW, axis=1)
            acc = acc + (s * masks_c[idx:idx + 1, :]) * wdw_c[:, t:t + 1]
        h = acc.astype(jnp.float32) + bdw

        # ---- GELU (exact erf matches nn.GELU default); dropout(0)=identity.
        h = jax.nn.gelu(h, approximate=True) if gelu_approx else _gelu_exact(h)

        # ---- fc2 (1x1 conv): (cout,hid)@(hid,HW).
        out = jnp.dot(w2t, h.astype(w2t.dtype),
                      preferred_element_type=jnp.float32) + b2
        o_ref[n] = out.astype(o_ref.dtype)


def _pick_batch_block(N, HW, hid):
    """Smallest nb (divisor of N) giving >= ~1024 lanes of work per grid step,
    keeping the grid length >= 2 (megacore / pipelining) and the per-step
    (hid, HW) temporaries far below v7x's 64 MiB VMEM."""
    nb = 1
    for cand in range(1, N + 1):
        if N % cand:
            continue
        if N >= 2 and N // cand < 2:
            break                                 # keep at least 2 grid steps
        if cand * hid * HW * 4 * 8 > (8 << 20):   # ~8 live (hid,HW) f32 temps
            break
        nb = cand
        if cand * HW >= 1024:
            break
    return nb


def _build_masks(H, W):
    """(8, HW) f32 validity masks (evaluated at the destination position) for
    the 8 non-center taps, in _TAPS order.  Also neutralize roll wrap-around."""
    HW = H * W
    ii = jnp.arange(HW, dtype=jnp.int32) // W
    jj = jnp.arange(HW, dtype=jnp.int32) % W
    ones = jnp.ones((HW,), bool)
    row = {-1: ii >= 1, 0: ones, 1: ii <= H - 2}
    col = {-1: jj >= 1, 0: ones, 1: jj <= W - 2}
    return jnp.stack([(row[di] & col[dj]).astype(jnp.float32)
                      for di, dj in _TAPS])


def mixmlp_pallas(x_nchw, params, *, batch_block=None, use_bf16_mxu=True,
                  dw_bf16=False, gelu_approx=False):
    """x_nchw: (N, Cin, H, W) float32 (PyTorch layout). Returns (N, Cout, H, W)."""
    w1, b1, wdw, bdw, w2, b2 = params
    N, cin, H, W = x_nchw.shape
    hid = w1.shape[1]
    cout = w2.shape[1]
    HW = H * W

    nb = batch_block or _pick_batch_block(N, HW, hid)
    assert N % nb == 0, "batch_block must divide N"
    G = N // nb

    mxu_dt = jnp.bfloat16 if use_bf16_mxu else x_nchw.dtype
    # Free reshape (no transpose): channels on sublanes, H*W on lanes.
    x_blk = x_nchw.reshape(N, cin, HW).astype(mxu_dt)

    masks = _build_masks(H, W)
    w1t = jnp.transpose(w1).astype(mxu_dt)        # (hid, cin)
    w2t = jnp.transpose(w2).astype(mxu_dt)        # (cout, hid)
    wdwt = jnp.transpose(wdw)                     # (hid, 9)
    b1c = jnp.transpose(b1)                       # (hid, 1)
    bdwc = jnp.transpose(bdw)                     # (hid, 1)
    b2c = jnp.transpose(b2)                       # (cout, 1)

    kernel = functools.partial(mixmlp_kernel, H=H, W=W, nb=nb,
                               dw_bf16=dw_bf16, gelu_approx=gelu_approx)

    flops = 2 * N * HW * hid * (cin + 9 + cout)
    small = (masks, w1t, b1c, wdwt, bdwc, w2t, b2c)
    bytes_accessed = (x_blk.size * x_blk.dtype.itemsize
                      + N * cout * HW * x_nchw.dtype.itemsize
                      + sum(a.size * a.dtype.itemsize for a in small))

    out_blk = pl.pallas_call(
        kernel,
        out_shape=jax.ShapeDtypeStruct((N, cout, HW), x_nchw.dtype),
        grid=(G,),
        in_specs=[
            pl.BlockSpec((8, HW), lambda g: (0, 0)),           # boundary masks
            pl.BlockSpec((nb, cin, HW), lambda g: (g, 0, 0)),  # x block
            pl.BlockSpec((hid, cin), lambda g: (0, 0)),        # fc1 weight^T
            pl.BlockSpec((hid, 1), lambda g: (0, 0)),          # fc1 bias
            pl.BlockSpec((hid, 9), lambda g: (0, 0)),          # dw weight (C,9)
            pl.BlockSpec((hid, 1), lambda g: (0, 0)),          # dw bias
            pl.BlockSpec((cout, hid), lambda g: (0, 0)),       # fc2 weight^T
            pl.BlockSpec((cout, 1), lambda g: (0, 0)),         # fc2 bias
        ],
        out_specs=pl.BlockSpec((nb, cout, HW), lambda g: (g, 0, 0)),
        compiler_params=pltpu.CompilerParams(
            dimension_semantics=("parallel",)),
        cost_estimate=pl.CostEstimate(
            flops=flops, transcendentals=N * hid * HW,
            bytes_accessed=bytes_accessed),
    )(masks, x_blk, w1t, b1c, wdwt, bdwc, w2t, b2c)

    # Free reshape back to NCHW.
    return out_blk.reshape(N, cout, H, W)


def mixmlp_reference(x_nchw, params):
    """Pure-JAX reference mirroring the PyTorch forward (NCHW in/out)."""
    w1, b1, wdw, bdw, w2, b2 = params
    x = jnp.transpose(x_nchw, (0, 2, 3, 1))                      # NHWC
    h = jnp.einsum('nhwc,cd->nhwd', x, w1) + b1[0]
    N, H, W, hid = h.shape
    hp = jnp.pad(h, ((0, 0), (1, 1), (1, 1), (0, 0)))
    acc = jnp.zeros_like(h)
    for kh in range(3):
        for kw in range(3):
            acc = acc + hp[:, kh:kh + H, kw:kw + W, :] * wdw[kh * 3 + kw]
    h = jax.nn.gelu(acc + bdw[0], approximate=False)
    out = jnp.einsum('nhwd,de->nhwe', h, w2) + b2[0]
    return jnp.transpose(out, (0, 3, 1, 2))                      # NCHW


def init_params(key, in_features, hidden_features, out_features):
    """Deterministic init matching MixMlp._init_weights for Conv2d layers."""
    k1, k2, k3 = jax.random.split(key, 3)
    # fc1: Conv2d(in, hidden, 1): fan_out = hidden -> std = sqrt(2/hidden)
    w1 = jax.random.normal(k1, (in_features, hidden_features), jnp.float32) * jnp.sqrt(
        2.0 / hidden_features)
    b1 = jnp.zeros((1, hidden_features), jnp.float32)
    # dwconv: Conv2d(hidden, hidden, 3, groups=hidden): fan_out = 9
    wdw = jax.random.normal(k2, (9, hidden_features), jnp.float32) * jnp.sqrt(2.0 / 9.0)
    bdw = jnp.zeros((1, hidden_features), jnp.float32)
    # fc2: Conv2d(hidden, out, 1): fan_out = out -> std = sqrt(2/out)
    w2 = jax.random.normal(k3, (hidden_features, out_features), jnp.float32) * jnp.sqrt(
        2.0 / out_features)
    b2 = jnp.zeros((1, out_features), jnp.float32)
    return (w1, b1, wdw, bdw, w2, b2)


if __name__ == "__main__":
    N, Cin, H, W = 2, 4, 16, 16
    hidden = 32
    Cout = Cin  # out_features defaults to in_features

    key = jax.random.PRNGKey(0)
    kx, kp = jax.random.split(key)
    x_nchw = jax.random.normal(kx, (N, Cin, H, W), jnp.float32)   # PyTorch NCHW
    params = init_params(kp, Cin, hidden, Cout)

    ref = jax.block_until_ready(mixmlp_reference(x_nchw, params))

    # Default config: bf16 MXU operands (f32 accumulate), f32 taps, exact GELU.
    out = jax.block_until_ready(mixmlp_pallas(x_nchw, params))
    assert out.shape == (N, Cout, H, W)
    assert jnp.allclose(out, ref, rtol=3e-2, atol=3e-2), (
        f"bf16 path: max abs err {jnp.max(jnp.abs(out - ref))}")

    # f32-operand path exercises the other MXU branch (structure check).
    out32 = jax.block_until_ready(
        mixmlp_pallas(x_nchw, params, use_bf16_mxu=False))
    assert jnp.allclose(out32, ref, rtol=3e-2, atol=3e-2), (
        f"f32 path: max abs err {jnp.max(jnp.abs(out32 - ref))}")

    print("KERNEL_OK")
</pallas_src>

<mosaic_0001>
module attributes {stable_mosaic.version = 11 : i64} {
  func.func @mixmlp_kernel(%arg0: i32, %arg1: memref<8x256xf32, #tpu.memory_space<vmem>>, %arg2: memref<1x4x256xbf16, #tpu.memory_space<vmem>>, %arg3: memref<32x4xbf16, #tpu.memory_space<vmem>>, %arg4: memref<32x1xf32, #tpu.memory_space<vmem>>, %arg5: memref<32x9xf32, #tpu.memory_space<vmem>>, %arg6: memref<32x1xf32, #tpu.memory_space<vmem>>, %arg7: memref<4x32xbf16, #tpu.memory_space<vmem>>, %arg8: memref<4x1xf32, #tpu.memory_space<vmem>>, %arg9: memref<1x4x256xf32, #tpu.memory_space<vmem>>) attributes {dimension_semantics = [#tpu.dimension_semantics<parallel>], iteration_bounds = array<i64: 2>, scalar_prefetch = 0 : i64, scratch_operands = 0 : i64, tpu.core_type = #tpu.core_type<tc>, window_params = [{pipeline_mode = #tpu.pipeline_mode<synchronous>, transform_indices = @transform_0, window_bounds = array<i64: 8, 256>}, {transform_indices = @transform_1, window_bounds = array<i64: 1, 4, 256>}, {pipeline_mode = #tpu.pipeline_mode<synchronous>, transform_indices = @transform_2, window_bounds = array<i64: 32, 4>}, {pipeline_mode = #tpu.pipeline_mode<synchronous>, transform_indices = @transform_3, window_bounds = array<i64: 32, 1>}, {pipeline_mode = #tpu.pipeline_mode<synchronous>, transform_indices = @transform_4, window_bounds = array<i64: 32, 9>}, {pipeline_mode = #tpu.pipeline_mode<synchronous>, transform_indices = @transform_5, window_bounds = array<i64: 32, 1>}, {pipeline_mode = #tpu.pipeline_mode<synchronous>, transform_indices = @transform_6, window_bounds = array<i64: 4, 32>}, {pipeline_mode = #tpu.pipeline_mode<synchronous>, transform_indices = @transform_7, window_bounds = array<i64: 4, 1>}, {transform_indices = @transform_8, window_bounds = array<i64: 1, 4, 256>}]} {
    %c0 = arith.constant 0 : index
    %c0_0 = arith.constant 0 : index
    %0 = vector.load %arg1[%c0, %c0_0] : memref<8x256xf32, #tpu.memory_space<vmem>>, vector<8x256xf32>
    %c0_1 = arith.constant 0 : index
    %c0_2 = arith.constant 0 : index
    %1 = vector.load %arg3[%c0_1, %c0_2] : memref<32x4xbf16, #tpu.memory_space<vmem>>, vector<32x4xbf16>
    %c0_3 = arith.constant 0 : index
    %c0_4 = arith.constant 0 : index
    %2 = vector.load %arg7[%c0_3, %c0_4] : memref<4x32xbf16, #tpu.memory_space<vmem>>, vector<4x32xbf16>
    %c0_5 = arith.constant 0 : index
    %c0_6 = arith.constant 0 : index
    %3 = vector.load %arg5[%c0_5, %c0_6] : memref<32x9xf32, #tpu.memory_space<vmem>>, vector<32x9xf32>
    %c0_7 = arith.constant 0 : index
    %c0_8 = arith.constant 0 : index
    %4 = vector.load %arg4[%c0_7, %c0_8] : memref<32x1xf32, #tpu.memory_space<vmem>>, vector<32x1xf32>
    %c0_9 = arith.constant 0 : index
    %c0_10 = arith.constant 0 : index
    %5 = vector.load %arg6[%c0_9, %c0_10] : memref<32x1xf32, #tpu.memory_space<vmem>>, vector<32x1xf32>
    %c0_11 = arith.constant 0 : index
    %c0_12 = arith.constant 0 : index
    %6 = vector.load %arg8[%c0_11, %c0_12] : memref<4x1xf32, #tpu.memory_space<vmem>>, vector<4x1xf32>
    %c0_13 = arith.constant 0 : index
    %c0_14 = arith.constant 0 : index
    %c0_15 = arith.constant 0 : index
    %7 = vector.load %arg2[%c0_13, %c0_14, %c0_15] : memref<1x4x256xbf16, #tpu.memory_space<vmem>>, vector<1x4x256xbf16>
    %8 = vector.shape_cast %7 : vector<1x4x256xbf16> to vector<4x256xbf16>
    %cst = arith.constant dense<0.000000e+00> : vector<32x256xf32>
    %9 = tpu.matmul %1, %8, %cst {dimension_numbers = #tpu.dot_dimension_numbers<[1], [0], [0], [1], [0, 0, 1, 1], [], []>} : vector<32x4xbf16>, vector<4x256xbf16>, vector<32x256xf32> -> vector<32x256xf32>
    %10 = vector.broadcast %4 : vector<32x1xf32> to vector<32x256xf32>
    %11 = arith.addf %9, %10 : vector<32x256xf32>
    %12 = vector.extract_strided_slice %3 {offsets = [0, 4], sizes = [32, 1], strides = [1, 1]} : vector<32x9xf32> to vector<32x1xf32>
    %13 = vector.broadcast %12 : vector<32x1xf32> to vector<32x256xf32>
    %14 = arith.mulf %11, %13 : vector<32x256xf32>
    %c17_i32 = arith.constant 17 : i32
    %15 = tpu.dynamic_rotate %11 by %c17_i32 dim 1 : vector<32x256xf32>, i32 -> vector<32x256xf32>
    %16 = vector.extract_strided_slice %0 {offsets = [0, 0], sizes = [1, 256], strides = [1, 1]} : vector<8x256xf32> to vector<1x256xf32>
    %17 = vector.broadcast %16 : vector<1x256xf32> to vector<32x256xf32>
    %18 = arith.mulf %15, %17 : vector<32x256xf32>
    %19 = vector.extract_strided_slice %3 {offsets = [0, 0], sizes = [32, 1], strides = [1, 1]} : vector<32x9xf32> to vector<32x1xf32>
    %20 = vector.broadcast %19 : vector<32x1xf32> to vector<32x256xf32>
    %21 = arith.mulf %18, %20 : vector<32x256xf32>
    %22 = arith.addf %14, %21 : vector<32x256xf32>
    %c16_i32 = arith.constant 16 : i32
    %23 = tpu.dynamic_rotate %11 by %c16_i32 dim 1 : vector<32x256xf32>, i32 -> vector<32x256xf32>
    %24 = vector.extract_strided_slice %0 {offsets = [1, 0], sizes = [1, 256], strides = [1, 1]} : vector<8x256xf32> to vector<1x256xf32>
    %25 = vector.broadcast %24 : vector<1x256xf32> to vector<32x256xf32>
    %26 = arith.mulf %23, %25 : vector<32x256xf32>
    %27 = vector.extract_strided_slice %3 {offsets = [0, 1], sizes = [32, 1], strides = [1, 1]} : vector<32x9xf32> to vector<32x1xf32>
    %28 = vector.broadcast %27 : vector<32x1xf32> to vector<32x256xf32>
    %29 = arith.mulf %26, %28 : vector<32x256xf32>
    %30 = arith.addf %22, %29 : vector<32x256xf32>
    %c15_i32 = arith.constant 15 : i32
    %31 = tpu.dynamic_rotate %11 by %c15_i32 dim 1 : vector<32x256xf32>, i32 -> vector<32x256xf32>
    %32 = vector.extract_strided_slice %0 {offsets = [2, 0], sizes = [1, 256], strides = [1, 1]} : vector<8x256xf32> to vector<1x256xf32>
    %33 = vector.broadcast %32 : vector<1x256xf32> to vector<32x256xf32>
    %34 = arith.mulf %31, %33 : vector<32x256xf32>
    %35 = vector.extract_strided_slice %3 {offsets = [0, 2], sizes = [32, 1], strides = [1, 1]} : vector<32x9xf32> to vector<32x1xf32>
    %36 = vector.broadcast %35 : vector<32x1xf32> to vector<32x256xf32>
    %37 = arith.mulf %34, %36 : vector<32x256xf32>
    %38 = arith.addf %30, %37 : vector<32x256xf32>
    %c1_i32 = arith.constant 1 : i32
    %39 = tpu.dynamic_rotate %11 by %c1_i32 dim 1 : vector<32x256xf32>, i32 -> vector<32x256xf32>
    %40 = vector.extract_strided_slice %0 {offsets = [3, 0], sizes = [1, 256], strides = [1, 1]} : vector<8x256xf32> to vector<1x256xf32>
    %41 = vector.broadcast %40 : vector<1x256xf32> to vector<32x256xf32>
    %42 = arith.mulf %39, %41 : vector<32x256xf32>
    %43 = vector.extract_strided_slice %3 {offsets = [0, 3], sizes = [32, 1], strides = [1, 1]} : vector<32x9xf32> to vector<32x1xf32>
    %44 = vector.broadcast %43 : vector<32x1xf32> to vector<32x256xf32>
    %45 = arith.mulf %42, %44 : vector<32x256xf32>
    %46 = arith.addf %38, %45 : vector<32x256xf32>
    %c255_i32 = arith.constant 255 : i32
    %47 = tpu.dynamic_rotate %11 by %c255_i32 dim 1 : vector<32x256xf32>, i32 -> vector<32x256xf32>
    %48 = vector.extract_strided_slice %0 {offsets = [4, 0], sizes = [1, 256], strides = [1, 1]} : vector<8x256xf32> to vector<1x256xf32>
    %49 = vector.broadcast %48 : vector<1x256xf32> to vector<32x256xf32>
    %50 = arith.mulf %47, %49 : vector<32x256xf32>
    %51 = vector.extract_strided_slice %3 {offsets = [0, 5], sizes = [32, 1], strides = [1, 1]} : vector<32x9xf32> to vector<32x1xf32>
    %52 = vector.broadcast %51 : vector<32x1xf32> to vector<32x256xf32>
    %53 = arith.mulf %50, %52 : vector<32x256xf32>
    %54 = arith.addf %46, %53 : vector<32x256xf32>
    %c241_i32 = arith.constant 241 : i32
    %55 = tpu.dynamic_rotate %11 by %c241_i32 dim 1 : vector<32x256xf32>, i32 -> vector<32x256xf32>
    %56 = vector.extract_strided_slice %0 {offsets = [5, 0], sizes = [1, 256], strides = [1, 1]} : vector<8x256xf32> to vector<1x256xf32>
    %57 = vector.broadcast %56 : vector<1x256xf32> to vector<32x256xf32>
    %58 = arith.mulf %55, %57 : vector<32x256xf32>
    %59 = vector.extract_strided_slice %3 {offsets = [0, 6], sizes = [32, 1], strides = [1, 1]} : vector<32x9xf32> to vector<32x1xf32>
    %60 = vector.broadcast %59 : vector<32x1xf32> to vector<32x256xf32>
    %61 = arith.mulf %58, %60 : vector<32x256xf32>
    %62 = arith.addf %54, %61 : vector<32x256xf32>
    %c240_i32 = arith.constant 240 : i32
    %63 = tpu.dynamic_rotate %11 by %c240_i32 dim 1 : vector<32x256xf32>, i32 -> vector<32x256xf32>
    %64 = vector.extract_strided_slice %0 {offsets = [6, 0], sizes = [1, 256], strides = [1, 1]} : vector<8x256xf32> to vector<1x256xf32>
    %65 = vector.broadcast %64 : vector<1x256xf32> to vector<32x256xf32>
    %66 = arith.mulf %63, %65 : vector<32x256xf32>
    %67 = vector.extract_strided_slice %3 {offsets = [0, 7], sizes = [32, 1], strides = [1, 1]} : vector<32x9xf32> to vector<32x1xf32>
    %68 = vector.broadcast %67 : vector<32x1xf32> to vector<32x256xf32>
    %69 = arith.mulf %66, %68 : vector<32x256xf32>
    %70 = arith.addf %62, %69 : vector<32x256xf32>
    %c239_i32 = arith.constant 239 : i32
    %71 = tpu.dynamic_rotate %11 by %c239_i32 dim 1 : vector<32x256xf32>, i32 -> vector<32x256xf32>
    %72 = vector.extract_strided_slice %0 {offsets = [7, 0], sizes = [1, 256], strides = [1, 1]} : vector<8x256xf32> to vector<1x256xf32>
    %73 = vector.broadcast %72 : vector<1x256xf32> to vector<32x256xf32>
    %74 = arith.mulf %71, %73 : vector<32x256xf32>
    %75 = vector.extract_strided_slice %3 {offsets = [0, 8], sizes = [32, 1], strides = [1, 1]} : vector<32x9xf32> to vector<32x1xf32>
    %76 = vector.broadcast %75 : vector<32x1xf32> to vector<32x256xf32>
    %77 = arith.mulf %74, %76 : vector<32x256xf32>
    %78 = arith.addf %70, %77 : vector<32x256xf32>
    %79 = vector.broadcast %5 : vector<32x1xf32> to vector<32x256xf32>
    %80 = arith.addf %78, %79 : vector<32x256xf32>
    %cst_16 = arith.constant 0.707106769 : f32
    %81 = vector.broadcast %cst_16 : f32 to vector<32x256xf32>
    %82 = arith.mulf %80, %81 : vector<32x256xf32>
    %83 = math.absf %82 : vector<32x256xf32>
    %cst_17 = arith.constant 0.327591091 : f32
    %84 = vector.broadcast %cst_17 : f32 to vector<32x256xf32>
    %85 = arith.mulf %84, %83 : vector<32x256xf32>
    %cst_18 = arith.constant 1.000000e+00 : f32
    %86 = vector.broadcast %cst_18 : f32 to vector<32x256xf32>
    %87 = arith.addf %86, %85 : vector<32x256xf32>
    %cst_19 = arith.constant 1.000000e+00 : f32
    %88 = vector.broadcast %cst_19 : f32 to vector<32x256xf32>
    %89 = arith.divf %88, %87 : vector<32x256xf32>
    %cst_20 = arith.constant 1.06140542 : f32
    %90 = vector.broadcast %cst_20 : f32 to vector<32x256xf32>
    %91 = arith.mulf %89, %90 : vector<32x256xf32>
    %cst_21 = arith.constant -1.45315206 : f32
    %92 = vector.broadcast %cst_21 : f32 to vector<32x256xf32>
    %93 = arith.addf %92, %91 : vector<32x256xf32>
    %94 = arith.mulf %89, %93 : vector<32x256xf32>
    %cst_22 = arith.constant 1.42141378 : f32
    %95 = vector.broadcast %cst_22 : f32 to vector<32x256xf32>
    %96 = arith.addf %95, %94 : vector<32x256xf32>
    %97 = arith.mulf %89, %96 : vector<32x256xf32>
    %cst_23 = arith.constant -0.284496725 : f32
    %98 = vector.broadcast %cst_23 : f32 to vector<32x256xf32>
    %99 = arith.addf %98, %97 : vector<32x256xf32>
    %100 = arith.mulf %89, %99 : vector<32x256xf32>
    %cst_24 = arith.constant 0.254829586 : f32
    %101 = vector.broadcast %cst_24 : f32 to vector<32x256xf32>
    %102 = arith.addf %101, %100 : vector<32x256xf32>
    %103 = arith.mulf %89, %102 : vector<32x256xf32>
    %cst_25 = arith.constant 0.000000e+00 : f32
    %104 = vector.broadcast %cst_25 : f32 to vector<32x256xf32>
    %105 = arith.subf %104, %83 : vector<32x256xf32>
    %106 = arith.mulf %105, %83 : vector<32x256xf32>
    %107 = math.exp %106 : vector<32x256xf32>
    %108 = arith.mulf %103, %107 : vector<32x256xf32>
    %cst_26 = arith.constant 1.000000e+00 : f32
    %109 = vector.broadcast %cst_26 : f32 to vector<32x256xf32>
    %110 = arith.subf %109, %108 : vector<32x256xf32>
    %cst_27 = arith.constant 0.000000e+00 : f32
    %111 = vector.broadcast %cst_27 : f32 to vector<32x256xf32>
    %112 = arith.cmpf olt, %82, %111 : vector<32x256xf32>
    %cst_28 = arith.constant 0.000000e+00 : f32
    %113 = vector.broadcast %cst_28 : f32 to vector<32x256xf32>
    %114 = arith.subf %113, %110 : vector<32x256xf32>
    %115 = arith.select %112, %114, %110 : vector<32x256xi1>, vector<32x256xf32>
    %cst_29 = arith.constant 5.000000e-01 : f32
    %116 = vector.broadcast %cst_29 : f32 to vector<32x256xf32>
    %117 = arith.mulf %116, %80 : vector<32x256xf32>
    %cst_30 = arith.constant 1.000000e+00 : f32
    %118 = vector.broadcast %cst_30 : f32 to vector<32x256xf32>
    %119 = arith.addf %118, %115 : vector<32x256xf32>
    %120 = arith.mulf %117, %119 : vector<32x256xf32>
    %121 = arith.truncf %120 : vector<32x256xf32> to vector<32x256xbf16>
    %cst_31 = arith.constant dense<0.000000e+00> : vector<4x256xf32>
    %122 = tpu.matmul %2, %121, %cst_31 {dimension_numbers = #tpu.dot_dimension_numbers<[1], [0], [0], [1], [0, 0, 1, 1], [], []>} : vector<4x32xbf16>, vector<32x256xbf16>, vector<4x256xf32> -> vector<4x256xf32>
    %123 = vector.broadcast %6 : vector<4x1xf32> to vector<4x256xf32>
    %124 = arith.addf %122, %123 : vector<4x256xf32>
    %c0_32 = arith.constant 0 : index
    %c0_33 = arith.constant 0 : index
    %c0_34 = arith.constant 0 : index
    %125 = vector.load %arg9[%c0_32, %c0_33, %c0_34] : memref<1x4x256xf32, #tpu.memory_space<vmem>>, vector<1x4x256xf32>
    %126 = vector.shape_cast %125 : vector<1x4x256xf32> to vector<4x256xf32>
    %127 = vector.shape_cast %124 : vector<4x256xf32> to vector<1x4x256xf32>
    tpu.vector_store %arg9[%c0_32, %c0_33, %c0_34], %127 {strides = array<i32>} : memref<1x4x256xf32, #tpu.memory_space<vmem>>, vector<1x4x256xf32>,
    return
  }
  func.func @transform_0(%arg0: i32) -> (i32, i32) {
    %c0_i32 = arith.constant 0 : i32
    %c0_i32_0 = arith.constant 0 : i32
    %c0_i32_1 = arith.constant 0 : i32
    return %c0_i32, %c0_i32_0 : i32, i32
  }
  func.func @transform_1(%arg0: i32) -> (i32, i32, i32) {
    %c0_i32 = arith.constant 0 : i32
    %c0_i32_0 = arith.constant 0 : i32
    %c0_i32_1 = arith.constant 0 : i32
    return %arg0, %c0_i32, %c0_i32_0 : i32, i32, i32
  }
  func.func @transform_2(%arg0: i32) -> (i32, i32) {
    %c0_i32 = arith.constant 0 : i32
    %c0_i32_0 = arith.constant 0 : i32
    %c0_i32_1 = arith.constant 0 : i32
    return %c0_i32, %c0_i32_0 : i32, i32
  }
  func.func @transform_3(%arg0: i32) -> (i32, i32) {
    %c0_i32 = arith.constant 0 : i32
    %c0_i32_0 = arith.constant 0 : i32
    %c0_i32_1 = arith.constant 0 : i32
    return %c0_i32, %c0_i32_0 : i32, i32
  }
  func.func @transform_4(%arg0: i32) -> (i32, i32) {
    %c0_i32 = arith.constant 0 : i32
    %c0_i32_0 = arith.constant 0 : i32
    %c0_i32_1 = arith.constant 0 : i32
    return %c0_i32, %c0_i32_0 : i32, i32
  }
  func.func @transform_5(%arg0: i32) -> (i32, i32) {
    %c0_i32 = arith.constant 0 : i32
    %c0_i32_0 = arith.constant 0 : i32
    %c0_i32_1 = arith.constant 0 : i32
    return %c0_i32, %c0_i32_0 : i32, i32
  }
  func.func @transform_6(%arg0: i32) -> (i32, i32) {
    %c0_i32 = arith.constant 0 : i32
    %c0_i32_0 = arith.constant 0 : i32
    %c0_i32_1 = arith.constant 0 : i32
    return %c0_i32, %c0_i32_0 : i32, i32
  }
  func.func @transform_7(%arg0: i32) -> (i32, i32) {
    %c0_i32 = arith.constant 0 : i32
    %c0_i32_0 = arith.constant 0 : i32
    %c0_i32_1 = arith.constant 0 : i32
    return %c0_i32, %c0_i32_0 : i32, i32
  }
  func.func @transform_8(%arg0: i32) -> (i32, i32, i32) {
    %c0_i32 = arith.constant 0 : i32
    %c0_i32_0 = arith.constant 0 : i32
    %c0_i32_1 = arith.constant 0 : i32
    return %arg0, %c0_i32, %c0_i32_0 : i32, i32, i32
  }
}

</mosaic_0001>

<llo_original>
// kernel: tpu_custom_call.1
$region0: #{tpu_custom_call.1}
  #allocation0 [shape = 'u32[]', space=smem, size = 0x4, offset = 0x4, fixed_abs, tag = 'smem constant byte address 0x4 - core index']
  #allocation1 [shape = 'u32[72,128]{1,0:T(1,128)}', space=vmem, size = 0x9000, scoped, tag = 'internal scratch']
  %s0 = inlined_call_operand.vmem [shape: f32[8,256], index: 0, kind: input, shape index: {}]
  %s1 = inlined_call_operand.vmem [shape: bf16[2,4,256], index: 1, kind: input, shape index: {}]
  %s2 = inlined_call_operand.vmem [shape: bf16[32,4], index: 2, kind: input, shape index: {}]
  %s3 = inlined_call_operand.vmem [shape: f32[32,1], index: 3, kind: input, shape index: {}]
  %s4 = inlined_call_operand.vmem [shape: f32[32,9], index: 4, kind: input, shape index: {}]
  %s5 = inlined_call_operand.vmem [shape: f32[32,1], index: 5, kind: input, shape index: {}]
  %s6 = inlined_call_operand.vmem [shape: bf16[4,32], index: 6, kind: input, shape index: {}]
  %s7 = inlined_call_operand.vmem [shape: f32[4,1], index: 7, kind: input, shape index: {}]
  %s8 = inlined_call_operand.hbm [shape: f32[2,4,256], index: 8, kind: output, shape index: {}]
  %s9 = sld [smem:[#allocation0]]
  $region65: #{tpu_custom_call.1} parent=0
    _
  %s11 = ssub.s32 1, %s9
  %s12 = scalar_select 0, %s11, %s9
  $region1: #{tpu_custom_call.1} parent=0
    #allocation2 [shape = 'u8[8192]{0}', space=vmem, size = 0x2000, scoped, tag = 'output window, operand 0']
    #allocation3 [shape = 's32[2]{0}', space=sflag, size = 0x8, scoped, tag = 'scoped memory for tpu_custom_call.1']
    %13 = vsyncpa [#allocation3], 0
    %s14 = scalar_lea.sflag [#allocation3], 1
    %15 = vsyncpa %s14, 0
    loop: start=0, step=1, limit=4
    $region2: #{tpu_custom_call.1} parent=1 // loop_pre_header
      _
    $region3: #{tpu_custom_call.1} parent=1 // loop_header
      %s17 = sphi 0, %s21
      %p18 = scmp.ge.s32.totalorder %s17, 4
      %s25 = sphi 0, %s25
      %s27 = sphi 0, %s25
      %s28 = sphi 0, %s27
      %s42 = sphi 0, %s28
      %s48 = sphi 0, %s50
      %s51 = sphi 0, %s48
      %s52 = sphi 0, %s51
      %s68 = sphi 0, %s52
      %s72 = sphi 0, %s72
      %s74 = sphi 0, %s72
      %s75 = sphi 0, %s74
      %s89 = sphi 0, %s75
      %s93 = sphi 0, %s93
      %s95 = sphi 0, %s93
      %s96 = sphi 0, %s95
      %s110 = sphi 0, %s96
      %s114 = sphi 0, %s114
      %s116 = sphi 0, %s114
      %s117 = sphi 0, %s116
      %s131 = sphi 0, %s117
      %s135 = sphi 0, %s135
      %s137 = sphi 0, %s135
      %s138 = sphi 0, %s137
      %s152 = sphi 0, %s138
      %s156 = sphi 0, %s156
      %s158 = sphi 0, %s156
      %s159 = sphi 0, %s158
      %s173 = sphi 0, %s159
      %s177 = sphi 0, %s177
      %s179 = sphi 0, %s177
      %s180 = sphi 0, %s179
      %s194 = sphi 0, %s180
      %s200 = sphi 0, %s202
      %s203 = sphi 0, %s200
      %s204 = sphi 0, %s203
      %s220 = sphi 0, %s204
    $region4: #{tpu_custom_call.1} parent=1 // loop_header_branch
      %20 = sbr.rel (%p18) target = $region8
    $region5: #{tpu_custom_call.1} parent=1 // loop_body
      %s22 = ssub.s32 %s17, 1
      %s23 = ssub.s32 %s17, 2
      %s24 = sadd.s32 %s17, 1
      %s26 = sadd.s32 %s25, 1
      %p29 = scmp.eq.s32.totalorder %s17, 1
      %p30 = scmp.ne.s32.totalorder %s25, %s27
      %p31 = scmp.eq.s32.totalorder %s17, 0
      %p32 = por %p30, %p31
      %p33 = scmp.ne.s32.totalorder %s25, %s27
      %p34 = scmp.eq.s32.totalorder %s22, 1
      %p35 = por %p33, %p34
      %p36 = scmp.ne.s32.totalorder %s27, %s28
      %p37 = scmp.eq.s32.totalorder %s22, 0
      %p38 = por %p36, %p37
      %p39 = scmp.ne.s32.totalorder %s27, %s28
      %p40 = scmp.eq.s32.totalorder %s23, 1
      %p41 = por %p39, %p40
      %p43 = scmp.ne.s32.totalorder %s28, %s42
      %p44 = scmp.eq.s32.totalorder %s23, 0
      %p45 = por %p43, %p44
      %s46 = ssub.s32 %s17, %s24
      %p47 = scmp.eq.s32.totalorder %s46, 0
      %s49 = sadd.s32 %s48, 1
      %s50 = scalar_select %p47, %s48, %s49
      %p53 = pneg %p47
      %p54 = scmp.eq.s32.totalorder %s17, 1
      %p55 = por %p53, %p54
      %p56 = scmp.ne.s32.totalorder %s48, %s51
      %p57 = scmp.eq.s32.totalorder %s17, 0
      %p58 = por %p56, %p57
      %p59 = scmp.ne.s32.totalorder %s48, %s51
      %p60 = scmp.eq.s32.totalorder %s22, 1
      %p61 = por %p59, %p60
      %p62 = scmp.ne.s32.totalorder %s51, %s52
      %p63 = scmp.eq.s32.totalorder %s22, 0
      %p64 = por %p62, %p63
      %p65 = scmp.ne.s32.totalorder %s51, %s52
      %p66 = scmp.eq.s32.totalorder %s23, 1
      %p67 = por %p65, %p66
      %p69 = scmp.ne.s32.totalorder %s52, %s68
      %p70 = scmp.eq.s32.totalorder %s23, 0
      %p71 = por %p69, %p70
      %s73 = sadd.s32 %s72, 1
      %p76 = scmp.eq.s32.totalorder %s17, 1
      %p77 = scmp.ne.s32.totalorder %s72, %s74
      %p78 = scmp.eq.s32.totalorder %s17, 0
      %p79 = por %p77, %p78
      %p80 = scmp.ne.s32.totalorder %s72, %s74
      %p81 = scmp.eq.s32.totalorder %s22, 1
      %p82 = por %p80, %p81
      %p83 = scmp.ne.s32.totalorder %s74, %s75
      %p84 = scmp.eq.s32.totalorder %s22, 0
      %p85 = por %p83, %p84
      %p86 = scmp.ne.s32.totalorder %s74, %s75
      %p87 = scmp.eq.s32.totalorder %s23, 1
      %p88 = por %p86, %p87
      %p90 = scmp.ne.s32.totalorder %s75, %s89
      %p91 = scmp.eq.s32.totalorder %s23, 0
      %p92 = por %p90, %p91
      %s94 = sadd.s32 %s93, 1
      %p97 = scmp.eq.s32.totalorder %s17, 1
      %p98 = scmp.ne.s32.totalorder %s93, %s95
      %p99 = scmp.eq.s32.totalorder %s17, 0
      %p100 = por %p98, %p99
      %p101 = scmp.ne.s32.totalorder %s93, %s95
      %p102 = scmp.eq.s32.totalorder %s22, 1
      %p103 = por %p101, %p102
      %p104 = scmp.ne.s32.totalorder %s95, %s96
      %p105 = scmp.eq.s32.totalorder %s22, 0
      %p106 = por %p104, %p105
      %p107 = scmp.ne.s32.totalorder %s95, %s96
      %p108 = scmp.eq.s32.totalorder %s23, 1
      %p109 = por %p107, %p108
      %p111 = scmp.ne.s32.totalorder %s96, %s110
      %p112 = scmp.eq.s32.totalorder %s23, 0
      %p113 = por %p111, %p112
      %s115 = sadd.s32 %s114, 1
      %p118 = scmp.eq.s32.totalorder %s17, 1
      %p119 = scmp.ne.s32.totalorder %s114, %s116
      %p120 = scmp.eq.s32.totalorder %s17, 0
      %p121 = por %p119, %p120
      %p122 = scmp.ne.s32.totalorder %s114, %s116
      %p123 = scmp.eq.s32.totalorder %s22, 1
      %p124 = por %p122, %p123
      %p125 = scmp.ne.s32.totalorder %s116, %s117
      %p126 = scmp.eq.s32.totalorder %s22, 0
      %p127 = por %p125, %p126
      %p128 = scmp.ne.s32.totalorder %s116, %s117
      %p129 = scmp.eq.s32.totalorder %s23, 1
      %p130 = por %p128, %p129
      %p132 = scmp.ne.s32.totalorder %s117, %s131
      %p133 = scmp.eq.s32.totalorder %s23, 0
      %p134 = por %p132, %p133
      %s136 = sadd.s32 %s135, 1
      %p139 = scmp.eq.s32.totalorder %s17, 1
      %p140 = scmp.ne.s32.totalorder %s135, %s137
      %p141 = scmp.eq.s32.totalorder %s17, 0
      %p142 = por %p140, %p141
      %p143 = scmp.ne.s32.totalorder %s135, %s137
      %p144 = scmp.eq.s32.totalorder %s22, 1
      %p145 = por %p143, %p144
      %p146 = scmp.ne.s32.totalorder %s137, %s138
      %p147 = scmp.eq.s32.totalorder %s22, 0
      %p148 = por %p146, %p147
      %p149 = scmp.ne.s32.totalorder %s137, %s138
      %p150 = scmp.eq.s32.totalorder %s23, 1
      %p151 = por %p149, %p150
      %p153 = scmp.ne.s32.totalorder %s138, %s152
      %p154 = scmp.eq.s32.totalorder %s23, 0
      %p155 = por %p153, %p154
      %s157 = sadd.s32 %s156, 1
      %p160 = scmp.eq.s32.totalorder %s17, 1
      %p161 = scmp.ne.s32.totalorder %s156, %s158
      %p162 = scmp.eq.s32.totalorder %s17, 0
      %p163 = por %p161, %p162
      %p164 = scmp.ne.s32.totalorder %s156, %s158
      %p165 = scmp.eq.s32.totalorder %s22, 1
      %p166 = por %p164, %p165
      %p167 = scmp.ne.s32.totalorder %s158, %s159
      %p168 = scmp.eq.s32.totalorder %s22, 0
      %p169 = por %p167, %p168
      %p170 = scmp.ne.s32.totalorder %s158, %s159
      %p171 = scmp.eq.s32.totalorder %s23, 1
      %p172 = por %p170, %p171
      %p174 = scmp.ne.s32.totalorder %s159, %s173
      %p175 = scmp.eq.s32.totalorder %s23, 0
      %p176 = por %p174, %p175
      %s178 = sadd.s32 %s177, 1
      %p181 = scmp.eq.s32.totalorder %s17, 1
      %p182 = scmp.ne.s32.totalorder %s177, %s179
      %p183 = scmp.eq.s32.totalorder %s17, 0
      %p184 = por %p182, %p183
      %p185 = scmp.ne.s32.totalorder %s177, %s179
      %p186 = scmp.eq.s32.totalorder %s22, 1
      %p187 = por %p185, %p186
      %p188 = scmp.ne.s32.totalorder %s179, %s180
      %p189 = scmp.eq.s32.totalorder %s22, 0
      %p190 = por %p188, %p189
      %p191 = scmp.ne.s32.totalorder %s179, %s180
      %p192 = scmp.eq.s32.totalorder %s23, 1
      %p193 = por %p191, %p192
      %p195 = scmp.ne.s32.totalorder %s180, %s194
      %p196 = scmp.eq.s32.totalorder %s23, 0
      %p197 = por %p195, %p196
      %s198 = ssub.s32 %s17, %s24
      %p199 = scmp.eq.s32.totalorder %s198, 0
      %s201 = sadd.s32 %s200, 1
      %s202 = scalar_select %p199, %s200, %s201
      %p205 = pneg %p199
      %p206 = scmp.eq.s32.totalorder %s17, 1
      %p207 = por %p205, %p206
      %p208 = scmp.ne.s32.totalorder %s200, %s203
      %p209 = scmp.eq.s32.totalorder %s17, 0
      %p210 = por %p208, %p209
      %p211 = scmp.ne.s32.totalorder %s200, %s203
      %p212 = scmp.eq.s32.totalorder %s22, 1
      %p213 = por %p211, %p212
      %p214 = scmp.ne.s32.totalorder %s203, %s204
      %p215 = scmp.eq.s32.totalorder %s22, 0
      %p216 = por %p214, %p215
      %p217 = scmp.ne.s32.totalorder %s203, %s204
      %p218 = scmp.eq.s32.totalorder %s23, 1
      %p219 = por %p217, %p218
      %p221 = scmp.ne.s32.totalorder %s204, %s220
      %p222 = scmp.eq.s32.totalorder %s23, 0
      %p223 = por %p221, %p222
      %p224 = scmp.le.s32.totalorder 1, %s17
      %p225 = scmp.lt.s32.totalorder %s17, 3
      %p226 = pnand %p224, %p225
      %p227 = pneg %p226
      // Predicated region
      $region9: #{tpu_custom_call.1} parent=5 // pred_check
        _
      $region10: #{tpu_custom_call.1} parent=5 // pred_check_branch
        %229 = sbr.rel (%p226) target = $region12
      $region11: #{tpu_custom_call.1} parent=5 // pred_region
        %s230 = ssub.s32 %s17, 1
        // Predicated region
        $region13: #{tpu_custom_call.1} parent=11 // pred_check
          %p231 = pneg %p38
        $region14: #{tpu_custom_call.1} parent=11 // pred_check_branch
          %233 = sbr.rel (%p231) target = $region16
        $region15: #{tpu_custom_call.1} parent=11 // pred_region
          _
        $region16: #{tpu_custom_call.1} parent=11 // pred_fallthru
          _
        // Predicated region
        $region17: #{tpu_custom_call.1} parent=11 // pred_check
          %p234 = pneg %p85
        $region18: #{tpu_custom_call.1} parent=11 // pred_check_branch
          %236 = sbr.rel (%p234) target = $region20
        $region19: #{tpu_custom_call.1} parent=11 // pred_region
          _
        $region20: #{tpu_custom_call.1} parent=11 // pred_fallthru
          _
        // Predicated region
        $region21: #{tpu_custom_call.1} parent=11 // pred_check
          %p237 = pneg %p106
        $region22: #{tpu_custom_call.1} parent=11 // pred_check_branch
          %239 = sbr.rel (%p237) target = $region24
        $region23: #{tpu_custom_call.1} parent=11 // pred_region
          _
        $region24: #{tpu_custom_call.1} parent=11 // pred_fallthru
          _
        // Predicated region
        $region25: #{tpu_custom_call.1} parent=11 // pred_check
          %p240 = pneg %p127
        $region26: #{tpu_custom_call.1} parent=11 // pred_check_branch
          %242 = sbr.rel (%p240) target = $region28
        $region27: #{tpu_custom_call.1} parent=11 // pred_region
          _
        $region28: #{tpu_custom_call.1} parent=11 // pred_fallthru
          _
        // Predicated region
        $region29: #{tpu_custom_call.1} parent=11 // pred_check
          %p243 = pneg %p148
        $region30: #{tpu_custom_call.1} parent=11 // pred_check_branch
          %245 = sbr.rel (%p243) target = $region32
        $region31: #{tpu_custom_call.1} parent=11 // pred_region
          _
        $region32: #{tpu_custom_call.1} parent=11 // pred_fallthru
          _
        // Predicated region
        $region33: #{tpu_custom_call.1} parent=11 // pred_check
          %p246 = pneg %p169
        $region34: #{tpu_custom_call.1} parent=11 // pred_check_branch
          %248 = sbr.rel (%p246) target = $region36
        $region35: #{tpu_custom_call.1} parent=11 // pred_region
          _
        $region36: #{tpu_custom_call.1} parent=11 // pred_fallthru
          _
        // Predicated region
        $region37: #{tpu_custom_call.1} parent=11 // pred_check
          %p249 = pneg %p190
        $region38: #{tpu_custom_call.1} parent=11 // pred_check_branch
          %251 = sbr.rel (%p249) target = $region40
        $region39: #{tpu_custom_call.1} parent=11 // pred_region
          _
        $region40: #{tpu_custom_call.1} parent=11 // pred_fallthru
          _
      $region12: #{tpu_custom_call.1} parent=5 // pred_fallthru
        _
      %p252 = scmp.lt.s32.totalorder %s17, 2
      // Predicated region
      $region41: #{tpu_custom_call.1} parent=5 // pred_check
        %p253 = pneg %p252
      $region42: #{tpu_custom_call.1} parent=5 // pred_check_branch
        %255 = sbr.rel (%p253) target = $region44
      $region43: #{tpu_custom_call.1} parent=5 // pred_region
        // Predicated region
        $region45: #{tpu_custom_call.1} parent=43 // pred_check
          %p256 = pneg %p58
        $region46: #{tpu_custom_call.1} parent=43 // pred_check_branch
          %258 = sbr.rel (%p256) target = $region48
        $region47: #{tpu_custom_call.1} parent=43 // pred_region
          %p259 = scmp.lt.s32.totalorder %s17, 1
          %s260 = scalar_select %p259, %s17, 1
          %s261 = smul.addr %s260, 2
          %s262 = smul.addr %s261, 2
          %s263 = scalar_lea.vmem %s1, %s262
        $region48: #{tpu_custom_call.1} parent=43 // pred_fallthru
          _
      $region44: #{tpu_custom_call.1} parent=5 // pred_fallthru
        _
      %p264 = scmp.le.s32.totalorder 1, %s17
      %p265 = scmp.lt.s32.totalorder %s17, 3
      %p266 = pnand %p264, %p265
      %p267 = pneg %p266
      // Predicated region
      $region49: #{tpu_custom_call.1} parent=5 // pred_check
        _
      $region50: #{tpu_custom_call.1} parent=5 // pred_check_branch
        %269 = sbr.rel (%p266) target = $region52
      $region51: #{tpu_custom_call.1} parent=5 // pred_region
        %s270 = ssub.s32 %s17, 1
        %p271 = pneg %p38
        %p272 = pneg %p35
        %p273 = scmp.lt.s32.totalorder %s22, 1
        %s274 = scalar_select %p273, %s22, 1
        %s275 = smul.addr %s274, 2
        %s276 = smul.addr %s275, 2
        %s277 = scalar_lea.vmem %s1, %s276
        %p278 = pneg %p64
        %p279 = pneg %p61
        %p280 = pneg %p85
        %p281 = pneg %p82
        %p282 = pneg %p106
        %p283 = pneg %p103
        %p284 = pneg %p127
        %p285 = pneg %p124
        %p286 = pneg %p148
        %p287 = pneg %p145
        %p288 = pneg %p169
        %p289 = pneg %p166
        %p290 = pneg %p190
        %p291 = pneg %p187
        %p292 = pneg %p216
        %p293 = pneg %p213
        %s294 = sand.u32 %s203, 1
        %s295 = scalar_lea.sflag [#allocation3], %s294
        %s296 = sand.u32 %s203, 1
        %s297 = smul.addr %s296, 8
        %s298 = scalar_lea.vmem [#allocation2], %s297
        %p299 = scmp.lt.s32.totalorder %s22, 1
        %s300 = scalar_select %p299, %s22, 1
        %s301 = smul.addr %s300, 2
        %s302 = smul.addr %s301, 2
        %s303 = scalar_lea.vmem %s1, %s302
        %v305 = vld [vmem:[%s0] sm:$0xff]
        %v306 = vld [vmem:[%s0 + $0x8] sm:$0xff]
        %v307 = vld [vmem:[%s2] sm:$0xf]
        %v308 = vld [vmem:[%s2 + $0x4] sm:$0xf]
        %v309 = vld [vmem:[%s2 + $0x8] sm:$0xf]
        %v310 = vld [vmem:[%s2 + $0xc] sm:$0xf]
        %v311 = vld [vmem:[%s6] sm:$0x3]
        %v312 = vld [vmem:[%s4] sm:$0xff]
        %v313 = vld [vmem:[%s4 + $0x8] sm:$0xff]
        %v314 = vld [vmem:[%s4 + $0x10] sm:$0xff]
        %v315 = vld [vmem:[%s4 + $0x18] sm:$0xff]
        %v316 = vld [vmem:[%s3] sm:$0xff]
        %v317 = vld [vmem:[%s3 + $0x8] sm:$0xff]
        %v318 = vld [vmem:[%s3 + $0x10] sm:$0xff]
        %v319 = vld [vmem:[%s3 + $0x18] sm:$0xff]
        %v320 = vld [vmem:[%s5] sm:$0xff]
        %v321 = vld [vmem:[%s5 + $0x8] sm:$0xff]
        %v322 = vld [vmem:[%s5 + $0x10] sm:$0xff]
        %v323 = vld [vmem:[%s5 + $0x18] sm:$0xff]
        %v324 = vld [vmem:[%s7] sm:$0xf]
        %v325 = vld [vmem:[%s303] sm:$0xf]
        %327 = vset.pattern.permute.xlu0 0
        %328 = vperm.xlu0 %327, %v316
        %v329 = vpop.permute.xlu0 %328
        %332 = vset.pattern.permute.xlu0 0
        %333 = vperm.xlu0 %332, %v317
        %v334 = vpop.permute.xlu0 %333
        %337 = vset.pattern.permute.xlu0 0
        %338 = vperm.xlu0 %337, %v318
        %v339 = vpop.permute.xlu0 %338
        %342 = vset.pattern.permute.xlu0 0
        %343 = vperm.xlu0 %342, %v319
        %v344 = vpop.permute.xlu0 %343
        %v350 = vunpack.c.l.b16 %v307
        %v351 = vunpack.c.l.b16 %v308
        %v352 = vunpack.c.l.b16 %v309
        %v353 = vunpack.c.l.b16 %v310
        %v354 = vpack.c.b16 %v351, %v350
        %v355 = vpack.c.b16 %v353, %v352
        %357 = vst [vmem:[#allocation1] ss:$4 sm:$0xff] %v325
        %v358 = vld.sshfl [vmem:[#allocation1] sm:$0xff pattern:$0x73625140]
        %v359 = vld.sshfl [vmem:[#allocation1 + $0x8] sm:$0xff pattern:$0x73625140]
        %vm360 = vcmask 31744
        %v362 = vsel %vm360, %v354, 0
        %v365 = vsel %vm360, %v355, 0
        %vm367 = vcmask 1041408
        %v368 = vsel %vm367, %v358, 0
        %v370 = vsel %vm367, %v359, 0
        %372 = vmatpush.bf16.msra.mxu0 0
        %373 = vmatpush.bf16.msra.mxu0 0
        %374 = vmatpush.bf16.msra.mxu0 0
        %375 = vmatpush.bf16.msra.mxu0 0
        %376 = vmatpush.bf16.msra.mxu0 0
        %377 = vmatpush.bf16.msra.mxu0 0
        %378 = vmatpush.bf16.msra.mxu0 0
        %379 = vmatpush.bf16.msra.mxu0 %v368
        %380 = vmatmul.bf16.gmra.mxu0 %v362
        %v381 = vpop.f32.mrf.mxu0
        %v382 = vadd.f32 %v329, %v381
        %v383 = vpop.f32.mrf.mxu0
        %v384 = vadd.f32 %v334, %v383
        %385 = vmatmul.bf16.gmra.mxu0 %v365
        %v386 = vpop.f32.mrf.mxu0
        %v387 = vadd.f32 %v339, %v386
        %v388 = vpop.f32.mrf.mxu0
        %v389 = vadd.f32 %v344, %v388
        %390 = vdwg.mxu0
        %391 = vmatpush.bf16.msra.mxu0 0
        %392 = vmatpush.bf16.msra.mxu0 0
        %393 = vmatpush.bf16.msra.mxu0 0
        %394 = vmatpush.bf16.msra.mxu0 0
        %395 = vmatpush.bf16.msra.mxu0 0
        %396 = vmatpush.bf16.msra.mxu0 0
        %397 = vmatpush.bf16.msra.mxu0 0
        %398 = vmatpush.bf16.msra.mxu0 %v370
        %399 = vmatmul.bf16.gmra.mxu0 %v362
        %v400 = vpop.f32.mrf.mxu0
        %v401 = vadd.f32 %v329, %v400
        %v402 = vpop.f32.mrf.mxu0
        %v403 = vadd.f32 %v334, %v402
        %404 = vmatmul.bf16.gmra.mxu0 %v365
        %v405 = vpop.f32.mrf.mxu0
        %v406 = vadd.f32 %v339, %v405
        %v407 = vpop.f32.mrf.mxu0
        %v408 = vadd.f32 %v344, %v407
        %409 = vdwg.mxu0
        %411 = vset.pattern.permute.xlu0 4
        %412 = vperm.xlu0 %411, %v312
        %v413 = vpop.permute.xlu0 %412
        %416 = vset.pattern.permute.xlu0 4
        %417 = vperm.xlu0 %416, %v313
        %v418 = vpop.permute.xlu0 %417
        %421 = vset.pattern.permute.xlu0 4
        %422 = vperm.xlu0 %421, %v314
        %v423 = vpop.permute.xlu0 %422
        %426 = vset.pattern.permute.xlu0 4
        %427 = vperm.xlu0 %426, %v315
        %v428 = vpop.permute.xlu0 %427
        %v430 = vmul.f32 %v382, %v413
        %v431 = vmul.f32 %v401, %v413
        %v432 = vmul.f32 %v384, %v418
        %v433 = vmul.f32 %v403, %v418
        %v434 = vmul.f32 %v387, %v423
        %v435 = vmul.f32 %v406, %v423
        %v436 = vmul.f32 %v389, %v428
        %v437 = vmul.f32 %v408, %v428
        %438 = vrot.lane.b32.xlu0 %v382, 17
        %v439 = vpop.permute.xlu0 %438
        %440 = vrot.lane.b32.xlu0 %v384, 17
        %v441 = vpop.permute.xlu0 %440
        %442 = vrot.lane.b32.xlu0 %v387, 17
        %v443 = vpop.permute.xlu0 %442
        %444 = vrot.lane.b32.xlu0 %v389, 17
        %v445 = vpop.permute.xlu0 %444
        %446 = vrot.lane.b32.xlu0 %v401, 17
        %v447 = vpop.permute.xlu0 %446
        %448 = vrot.lane.b32.xlu0 %v403, 17
        %v449 = vpop.permute.xlu0 %448
        %450 = vrot.lane.b32.xlu0 %v406, 17
        %v451 = vpop.permute.xlu0 %450
        %452 = vrot.lane.b32.xlu0 %v408, 17
        %v453 = vpop.permute.xlu0 %452
        %v454 = vlaneseq
        %v455 = vand.u32 %v454, 127
        %vm456 = vcmp.lt.s32.totalorder %v455, 17
        %v457 = vsel %vm456, %v439, %v447
        %v458 = vsel %vm456, %v441, %v449
        %v459 = vsel %vm456, %v443, %v451
        %v460 = vsel %vm456, %v445, %v453
        %v461 = vsel %vm456, %v447, %v439
        %v462 = vsel %vm456, %v449, %v441
        %v463 = vsel %vm456, %v451, %v443
        %v464 = vsel %vm456, %v453, %v445
        %v465 = vperm.slane %v305, 0
        %v466 = vperm.slane %v306, 0
        %v467 = vmul.f32 %v461, %v465
        %v468 = vmul.f32 %v457, %v466
        %v469 = vmul.f32 %v462, %v465
        %v470 = vmul.f32 %v458, %v466
        %v471 = vmul.f32 %v463, %v465
        %v472 = vmul.f32 %v459, %v466
        %v473 = vmul.f32 %v464, %v465
        %v474 = vmul.f32 %v460, %v466
        %475 = vset.pattern.permute.xlu0 0
        %476 = vperm.xlu0 %475, %v312
        %v477 = vpop.permute.xlu0 %476
        %479 = vset.pattern.permute.xlu0 0
        %480 = vperm.xlu0 %479, %v313
        %v481 = vpop.permute.xlu0 %480
        %483 = vset.pattern.permute.xlu0 0
        %484 = vperm.xlu0 %483, %v314
        %v485 = vpop.permute.xlu0 %484
        %487 = vset.pattern.permute.xlu0 0
        %488 = vperm.xlu0 %487, %v315
        %v489 = vpop.permute.xlu0 %488
        %v491 = vmul.f32 %v467, %v477
        %v492 = vmul.f32 %v468, %v477
        %v493 = vmul.f32 %v469, %v481
        %v494 = vmul.f32 %v470, %v481
        %v495 = vmul.f32 %v471, %v485
        %v496 = vmul.f32 %v472, %v485
        %v497 = vmul.f32 %v473, %v489
        %v498 = vmul.f32 %v474, %v489
        %v499 = vadd.f32 %v430, %v491
        %v500 = vadd.f32 %v431, %v492
        %v501 = vadd.f32 %v432, %v493
        %v502 = vadd.f32 %v433, %v494
        %v503 = vadd.f32 %v434, %v495
        %v504 = vadd.f32 %v435, %v496
        %v505 = vadd.f32 %v436, %v497
        %v506 = vadd.f32 %v437, %v498
        %507 = vrot.lane.b32.xlu0 %v382, 16
        %v508 = vpop.permute.xlu0 %507
        %509 = vrot.lane.b32.xlu0 %v384, 16
        %v510 = vpop.permute.xlu0 %509
        %511 = vrot.lane.b32.xlu0 %v387, 16
        %v512 = vpop.permute.xlu0 %511
        %513 = vrot.lane.b32.xlu0 %v389, 16
        %v514 = vpop.permute.xlu0 %513
        %515 = vrot.lane.b32.xlu0 %v401, 16
        %v516 = vpop.permute.xlu0 %515
        %517 = vrot.lane.b32.xlu0 %v403, 16
        %v518 = vpop.permute.xlu0 %517
        %519 = vrot.lane.b32.xlu0 %v406, 16
        %v520 = vpop.permute.xlu0 %519
        %521 = vrot.lane.b32.xlu0 %v408, 16
        %v522 = vpop.permute.xlu0 %521
        %vm523 = vcmp.lt.s32.totalorder %v455, 16
        %v524 = vsel %vm523, %v508, %v516
        %v525 = vsel %vm523, %v510, %v518
        %v526 = vsel %vm523, %v512, %v520
        %v527 = vsel %vm523, %v514, %v522
        %v528 = vsel %vm523, %v516, %v508
        %v529 = vsel %vm523, %v518, %v510
        %v530 = vsel %vm523, %v520, %v512
        %v531 = vsel %vm523, %v522, %v514
        %v532 = vperm.slane %v305, 1
        %v533 = vperm.slane %v306, 1
        %v534 = vmul.f32 %v528, %v532
        %v535 = vmul.f32 %v524, %v533
        %v536 = vmul.f32 %v529, %v532
        %v537 = vmul.f32 %v525, %v533
        %v538 = vmul.f32 %v530, %v532
        %v539 = vmul.f32 %v526, %v533
        %v540 = vmul.f32 %v531, %v532
        %v541 = vmul.f32 %v527, %v533
        %542 = vset.pattern.permute.xlu0 1
        %543 = vperm.xlu0 %542, %v312
        %v544 = vpop.permute.xlu0 %543
        %546 = vset.pattern.permute.xlu0 1
        %547 = vperm.xlu0 %546, %v313
        %v548 = vpop.permute.xlu0 %547
        %550 = vset.pattern.permute.xlu0 1
        %551 = vperm.xlu0 %550, %v314
        %v552 = vpop.permute.xlu0 %551
        %554 = vset.pattern.permute.xlu0 1
        %555 = vperm.xlu0 %554, %v315
        %v556 = vpop.permute.xlu0 %555
        %v558 = vmul.f32 %v534, %v544
        %v559 = vmul.f32 %v535, %v544
        %v560 = vmul.f32 %v536, %v548
        %v561 = vmul.f32 %v537, %v548
        %v562 = vmul.f32 %v538, %v552
        %v563 = vmul.f32 %v539, %v552
        %v564 = vmul.f32 %v540, %v556
        %v565 = vmul.f32 %v541, %v556
        %v566 = vadd.f32 %v499, %v558
        %v567 = vadd.f32 %v500, %v559
        %v568 = vadd.f32 %v501, %v560
        %v569 = vadd.f32 %v502, %v561
        %v570 = vadd.f32 %v503, %v562
        %v571 = vadd.f32 %v504, %v563
        %v572 = vadd.f32 %v505, %v564
        %v573 = vadd.f32 %v506, %v565
        %574 = vrot.lane.b32.xlu0 %v382, 15
        %v575 = vpop.permute.xlu0 %574
        %576 = vrot.lane.b32.xlu0 %v384, 15
        %v577 = vpop.permute.xlu0 %576
        %578 = vrot.lane.b32.xlu0 %v387, 15
        %v579 = vpop.permute.xlu0 %578
        %580 = vrot.lane.b32.xlu0 %v389, 15
        %v581 = vpop.permute.xlu0 %580
        %582 = vrot.lane.b32.xlu0 %v401, 15
        %v583 = vpop.permute.xlu0 %582
        %584 = vrot.lane.b32.xlu0 %v403, 15
        %v585 = vpop.permute.xlu0 %584
        %586 = vrot.lane.b32.xlu0 %v406, 15
        %v587 = vpop.permute.xlu0 %586
        %588 = vrot.lane.b32.xlu0 %v408, 15
        %v589 = vpop.permute.xlu0 %588
        %vm590 = vcmp.lt.s32.totalorder %v455, 15
        %v591 = vsel %vm590, %v575, %v583
        %v592 = vsel %vm590, %v577, %v585
        %v593 = vsel %vm590, %v579, %v587
        %v594 = vsel %vm590, %v581, %v589
        %v595 = vsel %vm590, %v583, %v575
        %v596 = vsel %vm590, %v585, %v577
        %v597 = vsel %vm590, %v587, %v579
        %v598 = vsel %vm590, %v589, %v581
        %v599 = vperm.slane %v305, 2
        %v600 = vperm.slane %v306, 2
        %v601 = vmul.f32 %v595, %v599
        %v602 = vmul.f32 %v591, %v600
        %v603 = vmul.f32 %v596, %v599
        %v604 = vmul.f32 %v592, %v600
        %v605 = vmul.f32 %v597, %v599
        %v606 = vmul.f32 %v593, %v600
        %v607 = vmul.f32 %v598, %v599
        %v608 = vmul.f32 %v594, %v600
        %609 = vset.pattern.permute.xlu0 2
        %610 = vperm.xlu0 %609, %v312
        %v611 = vpop.permute.xlu0 %610
        %613 = vset.pattern.permute.xlu0 2
        %614 = vperm.xlu0 %613, %v313
        %v615 = vpop.permute.xlu0 %614
        %617 = vset.pattern.permute.xlu0 2
        %618 = vperm.xlu0 %617, %v314
        %v619 = vpop.permute.xlu0 %618
        %621 = vset.pattern.permute.xlu0 2
        %622 = vperm.xlu0 %621, %v315
        %v623 = vpop.permute.xlu0 %622
        %v625 = vmul.f32 %v601, %v611
        %v626 = vmul.f32 %v602, %v611
        %v627 = vmul.f32 %v603, %v615
        %v628 = vmul.f32 %v604, %v615
        %v629 = vmul.f32 %v605, %v619
        %v630 = vmul.f32 %v606, %v619
        %v631 = vmul.f32 %v607, %v623
        %v632 = vmul.f32 %v608, %v623
        %v633 = vadd.f32 %v566, %v625
        %v634 = vadd.f32 %v567, %v626
        %v635 = vadd.f32 %v568, %v627
        %v636 = vadd.f32 %v569, %v628
        %v637 = vadd.f32 %v570, %v629
        %v638 = vadd.f32 %v571, %v630
        %v639 = vadd.f32 %v572, %v631
        %v640 = vadd.f32 %v573, %v632
        %641 = vrot.lane.b32.xlu0 %v382, 1
        %v642 = vpop.permute.xlu0 %641
        %643 = vrot.lane.b32.xlu0 %v384, 1
        %v644 = vpop.permute.xlu0 %643
        %645 = vrot.lane.b32.xlu0 %v387, 1
        %v646 = vpop.permute.xlu0 %645
        %647 = vrot.lane.b32.xlu0 %v389, 1
        %v648 = vpop.permute.xlu0 %647
        %649 = vrot.lane.b32.xlu0 %v401, 1
        %v650 = vpop.permute.xlu0 %649
        %651 = vrot.lane.b32.xlu0 %v403, 1
        %v652 = vpop.permute.xlu0 %651
        %653 = vrot.lane.b32.xlu0 %v406, 1
        %v654 = vpop.permute.xlu0 %653
        %655 = vrot.lane.b32.xlu0 %v408, 1
        %v656 = vpop.permute.xlu0 %655
        %vm657 = vcmp.lt.s32.totalorder %v455, 1
        %v658 = vsel %vm657, %v642, %v650
        %v659 = vsel %vm657, %v644, %v652
        %v660 = vsel %vm657, %v646, %v654
        %v661 = vsel %vm657, %v648, %v656
        %v662 = vsel %vm657, %v650, %v642
        %v663 = vsel %vm657, %v652, %v644
        %v664 = vsel %vm657, %v654, %v646
        %v665 = vsel %vm657, %v656, %v648
        %v666 = vperm.slane %v305, 3
        %v667 = vperm.slane %v306, 3
        %v668 = vmul.f32 %v662, %v666
        %v669 = vmul.f32 %v658, %v667
        %v670 = vmul.f32 %v663, %v666
        %v671 = vmul.f32 %v659, %v667
        %v672 = vmul.f32 %v664, %v666
        %v673 = vmul.f32 %v660, %v667
        %v674 = vmul.f32 %v665, %v666
        %v675 = vmul.f32 %v661, %v667
        %676 = vset.pattern.permute.xlu0 3
        %677 = vperm.xlu0 %676, %v312
        %v678 = vpop.permute.xlu0 %677
        %680 = vset.pattern.permute.xlu0 3
        %681 = vperm.xlu0 %680, %v313
        %v682 = vpop.permute.xlu0 %681
        %684 = vset.pattern.permute.xlu0 3
        %685 = vperm.xlu0 %684, %v314
        %v686 = vpop.permute.xlu0 %685
        %688 = vset.pattern.permute.xlu0 3
        %689 = vperm.xlu0 %688, %v315
        %v690 = vpop.permute.xlu0 %689
        %v692 = vmul.f32 %v668, %v678
        %v693 = vmul.f32 %v669, %v678
        %v694 = vmul.f32 %v670, %v682
        %v695 = vmul.f32 %v671, %v682
        %v696 = vmul.f32 %v672, %v686
        %v697 = vmul.f32 %v673, %v686
        %v698 = vmul.f32 %v674, %v690
        %v699 = vmul.f32 %v675, %v690
        %v700 = vadd.f32 %v633, %v692
        %v701 = vadd.f32 %v634, %v693
        %v702 = vadd.f32 %v635, %v694
        %v703 = vadd.f32 %v636, %v695
        %v704 = vadd.f32 %v637, %v696
        %v705 = vadd.f32 %v638, %v697
        %v706 = vadd.f32 %v639, %v698
        %v707 = vadd.f32 %v640, %v699
        %708 = vrot.lane.b32.xlu0 %v382, 127
        %v709 = vpop.permute.xlu0 %708
        %710 = vrot.lane.b32.xlu0 %v384, 127
        %v711 = vpop.permute.xlu0 %710
        %712 = vrot.lane.b32.xlu0 %v387, 127
        %v713 = vpop.permute.xlu0 %712
        %714 = vrot.lane.b32.xlu0 %v389, 127
        %v715 = vpop.permute.xlu0 %714
        %716 = vrot.lane.b32.xlu0 %v401, 127
        %v717 = vpop.permute.xlu0 %716
        %718 = vrot.lane.b32.xlu0 %v403, 127
        %v719 = vpop.permute.xlu0 %718
        %720 = vrot.lane.b32.xlu0 %v406, 127
        %v721 = vpop.permute.xlu0 %720
        %722 = vrot.lane.b32.xlu0 %v408, 127
        %v723 = vpop.permute.xlu0 %722
        %vm724 = vcmp.lt.s32.totalorder %v455, 127
        %v725 = vsel %vm724, %v709, %v717
        %v726 = vsel %vm724, %v711, %v719
        %v727 = vsel %vm724, %v713, %v721
        %v728 = vsel %vm724, %v715, %v723
        %v729 = vsel %vm724, %v717, %v709
        %v730 = vsel %vm724, %v719, %v711
        %v731 = vsel %vm724, %v721, %v713
        %v732 = vsel %vm724, %v723, %v715
        %v733 = vperm.slane %v305, 4
        %v734 = vperm.slane %v306, 4
        %v735 = vmul.f32 %v725, %v733
        %v736 = vmul.f32 %v729, %v734
        %v737 = vmul.f32 %v726, %v733
        %v738 = vmul.f32 %v730, %v734
        %v739 = vmul.f32 %v727, %v733
        %v740 = vmul.f32 %v731, %v734
        %v741 = vmul.f32 %v728, %v733
        %v742 = vmul.f32 %v732, %v734
        %743 = vset.pattern.permute.xlu0 5
        %744 = vperm.xlu0 %743, %v312
        %v745 = vpop.permute.xlu0 %744
        %747 = vset.pattern.permute.xlu0 5
        %748 = vperm.xlu0 %747, %v313
        %v749 = vpop.permute.xlu0 %748
        %751 = vset.pattern.permute.xlu0 5
        %752 = vperm.xlu0 %751, %v314
        %v753 = vpop.permute.xlu0 %752
        %755 = vset.pattern.permute.xlu0 5
        %756 = vperm.xlu0 %755, %v315
        %v757 = vpop.permute.xlu0 %756
        %v759 = vmul.f32 %v735, %v745
        %v760 = vmul.f32 %v736, %v745
        %v761 = vmul.f32 %v737, %v749
        %v762 = vmul.f32 %v738, %v749
        %v763 = vmul.f32 %v739, %v753
        %v764 = vmul.f32 %v740, %v753
        %v765 = vmul.f32 %v741, %v757
        %v766 = vmul.f32 %v742, %v757
        %v767 = vadd.f32 %v700, %v759
        %v768 = vadd.f32 %v701, %v760
        %v769 = vadd.f32 %v702, %v761
        %v770 = vadd.f32 %v703, %v762
        %v771 = vadd.f32 %v704, %v763
        %v772 = vadd.f32 %v705, %v764
        %v773 = vadd.f32 %v706, %v765
        %v774 = vadd.f32 %v707, %v766
        %775 = vrot.lane.b32.xlu0 %v382, 113
        %v776 = vpop.permute.xlu0 %775
        %777 = vrot.lane.b32.xlu0 %v384, 113
        %v778 = vpop.permute.xlu0 %777
        %779 = vrot.lane.b32.xlu0 %v387, 113
        %v780 = vpop.permute.xlu0 %779
        %781 = vrot.lane.b32.xlu0 %v389, 113
        %v782 = vpop.permute.xlu0 %781
        %783 = vrot.lane.b32.xlu0 %v401, 113
        %v784 = vpop.permute.xlu0 %783
        %785 = vrot.lane.b32.xlu0 %v403, 113
        %v786 = vpop.permute.xlu0 %785
        %787 = vrot.lane.b32.xlu0 %v406, 113
        %v788 = vpop.permute.xlu0 %787
        %789 = vrot.lane.b32.xlu0 %v408, 113
        %v790 = vpop.permute.xlu0 %789
        %vm791 = vcmp.lt.s32.totalorder %v455, 113
        %v792 = vsel %vm791, %v776, %v784
        %v793 = vsel %vm791, %v778, %v786
        %v794 = vsel %vm791, %v780, %v788
        %v795 = vsel %vm791, %v782, %v790
        %v796 = vsel %vm791, %v784, %v776
        %v797 = vsel %vm791, %v786, %v778
        %v798 = vsel %vm791, %v788, %v780
        %v799 = vsel %vm791, %v790, %v782
        %v800 = vperm.slane %v305, 5
        %v801 = vperm.slane %v306, 5
        %v802 = vmul.f32 %v792, %v800
        %v803 = vmul.f32 %v796, %v801
        %v804 = vmul.f32 %v793, %v800
        %v805 = vmul.f32 %v797, %v801
        %v806 = vmul.f32 %v794, %v800
        %v807 = vmul.f32 %v798, %v801
        %v808 = vmul.f32 %v795, %v800
        %v809 = vmul.f32 %v799, %v801
        %810 = vset.pattern.permute.xlu0 6
        %811 = vperm.xlu0 %810, %v312
        %v812 = vpop.permute.xlu0 %811
        %814 = vset.pattern.permute.xlu0 6
        %815 = vperm.xlu0 %814, %v313
        %v816 = vpop.permute.xlu0 %815
        %818 = vset.pattern.permute.xlu0 6
        %819 = vperm.xlu0 %818, %v314
        %v820 = vpop.permute.xlu0 %819
        %822 = vset.pattern.permute.xlu0 6
        %823 = vperm.xlu0 %822, %v315
        %v824 = vpop.permute.xlu0 %823
        %v826 = vmul.f32 %v802, %v812
        %v827 = vmul.f32 %v803, %v812
        %v828 = vmul.f32 %v804, %v816
        %v829 = vmul.f32 %v805, %v816
        %v830 = vmul.f32 %v806, %v820
        %v831 = vmul.f32 %v807, %v820
        %v832 = vmul.f32 %v808, %v824
        %v833 = vmul.f32 %v809, %v824
        %v834 = vadd.f32 %v767, %v826
        %v835 = vadd.f32 %v768, %v827
        %v836 = vadd.f32 %v769, %v828
        %v837 = vadd.f32 %v770, %v829
        %v838 = vadd.f32 %v771, %v830
        %v839 = vadd.f32 %v772, %v831
        %v840 = vadd.f32 %v773, %v832
        %v841 = vadd.f32 %v774, %v833
        %842 = vrot.lane.b32.xlu0 %v382, 112
        %v843 = vpop.permute.xlu0 %842
        %844 = vrot.lane.b32.xlu0 %v384, 112
        %v845 = vpop.permute.xlu0 %844
        %846 = vrot.lane.b32.xlu0 %v387, 112
        %v847 = vpop.permute.xlu0 %846
        %848 = vrot.lane.b32.xlu0 %v389, 112
        %v849 = vpop.permute.xlu0 %848
        %850 = vrot.lane.b32.xlu0 %v401, 112
        %v851 = vpop.permute.xlu0 %850
        %852 = vrot.lane.b32.xlu0 %v403, 112
        %v853 = vpop.permute.xlu0 %852
        %854 = vrot.lane.b32.xlu0 %v406, 112
        %v855 = vpop.permute.xlu0 %854
        %856 = vrot.lane.b32.xlu0 %v408, 112
        %v857 = vpop.permute.xlu0 %856
        %vm858 = vcmp.lt.s32.totalorder %v455, 112
        %v859 = vsel %vm858, %v843, %v851
        %v860 = vsel %vm858, %v845, %v853
        %v861 = vsel %vm858, %v847, %v855
        %v862 = vsel %vm858, %v849, %v857
        %v863 = vsel %vm858, %v851, %v843
        %v864 = vsel %vm858, %v853, %v845
        %v865 = vsel %vm858, %v855, %v847
        %v866 = vsel %vm858, %v857, %v849
        %v867 = vperm.slane %v305, 6
        %v868 = vperm.slane %v306, 6
        %v869 = vmul.f32 %v859, %v867
        %v870 = vmul.f32 %v863, %v868
        %v871 = vmul.f32 %v860, %v867
        %v872 = vmul.f32 %v864, %v868
        %v873 = vmul.f32 %v861, %v867
        %v874 = vmul.f32 %v865, %v868
        %v875 = vmul.f32 %v862, %v867
        %v876 = vmul.f32 %v866, %v868
        %877 = vset.pattern.permute.xlu0 7
        %878 = vperm.xlu0 %877, %v312
        %v879 = vpop.permute.xlu0 %878
        %881 = vset.pattern.permute.xlu0 7
        %882 = vperm.xlu0 %881, %v313
        %v883 = vpop.permute.xlu0 %882
        %885 = vset.pattern.permute.xlu0 7
        %886 = vperm.xlu0 %885, %v314
        %v887 = vpop.permute.xlu0 %886
        %889 = vset.pattern.permute.xlu0 7
        %890 = vperm.xlu0 %889, %v315
        %v891 = vpop.permute.xlu0 %890
        %v893 = vmul.f32 %v869, %v879
        %v894 = vmul.f32 %v870, %v879
        %v895 = vmul.f32 %v871, %v883
        %v896 = vmul.f32 %v872, %v883
        %v897 = vmul.f32 %v873, %v887
        %v898 = vmul.f32 %v874, %v887
        %v899 = vmul.f32 %v875, %v891
        %v900 = vmul.f32 %v876, %v891
        %v901 = vadd.f32 %v834, %v893
        %v902 = vadd.f32 %v835, %v894
        %v903 = vadd.f32 %v836, %v895
        %v904 = vadd.f32 %v837, %v896
        %v905 = vadd.f32 %v838, %v897
        %v906 = vadd.f32 %v839, %v898
        %v907 = vadd.f32 %v840, %v899
        %v908 = vadd.f32 %v841, %v900
        %909 = vrot.lane.b32.xlu0 %v382, 111
        %v910 = vpop.permute.xlu0 %909
        %911 = vrot.lane.b32.xlu0 %v384, 111
        %v912 = vpop.permute.xlu0 %911
        %913 = vrot.lane.b32.xlu0 %v387, 111
        %v914 = vpop.permute.xlu0 %913
        %915 = vrot.lane.b32.xlu0 %v389, 111
        %v916 = vpop.permute.xlu0 %915
        %917 = vrot.lane.b32.xlu0 %v401, 111
        %v918 = vpop.permute.xlu0 %917
        %919 = vrot.lane.b32.xlu0 %v403, 111
        %v920 = vpop.permute.xlu0 %919
        %921 = vrot.lane.b32.xlu0 %v406, 111
        %v922 = vpop.permute.xlu0 %921
        %923 = vrot.lane.b32.xlu0 %v408, 111
        %v924 = vpop.permute.xlu0 %923
        %vm925 = vcmp.lt.s32.totalorder %v455, 111
        %v926 = vsel %vm925, %v910, %v918
        %v927 = vsel %vm925, %v912, %v920
        %v928 = vsel %vm925, %v914, %v922
        %v929 = vsel %vm925, %v916, %v924
        %v930 = vsel %vm925, %v918, %v910
        %v931 = vsel %vm925, %v920, %v912
        %v932 = vsel %vm925, %v922, %v914
        %v933 = vsel %vm925, %v924, %v916
        %v934 = vperm.slane %v305, 7
        %v935 = vperm.slane %v306, 7
        %v936 = vmul.f32 %v926, %v934
        %v937 = vmul.f32 %v930, %v935
        %v938 = vmul.f32 %v927, %v934
        %v939 = vmul.f32 %v931, %v935
        %v940 = vmul.f32 %v928, %v934
        %v941 = vmul.f32 %v932, %v935
        %v942 = vmul.f32 %v929, %v934
        %v943 = vmul.f32 %v933, %v935
        %944 = vset.pattern.permute.xlu0 8
        %945 = vperm.xlu0 %944, %v312
        %v946 = vpop.permute.xlu0 %945
        %948 = vset.pattern.permute.xlu0 8
        %949 = vperm.xlu0 %948, %v313
        %v950 = vpop.permute.xlu0 %949
        %952 = vset.pattern.permute.xlu0 8
        %953 = vperm.xlu0 %952, %v314
        %v954 = vpop.permute.xlu0 %953
        %956 = vset.pattern.permute.xlu0 8
        %957 = vperm.xlu0 %956, %v315
        %v958 = vpop.permute.xlu0 %957
        %v960 = vmul.f32 %v936, %v946
        %v961 = vmul.f32 %v937, %v946
        %v962 = vmul.f32 %v938, %v950
        %v963 = vmul.f32 %v939, %v950
        %v964 = vmul.f32 %v940, %v954
        %v965 = vmul.f32 %v941, %v954
        %v966 = vmul.f32 %v942, %v958
        %v967 = vmul.f32 %v943, %v958
        %v968 = vadd.f32 %v901, %v960
        %v969 = vadd.f32 %v902, %v961
        %v970 = vadd.f32 %v903, %v962
        %v971 = vadd.f32 %v904, %v963
        %v972 = vadd.f32 %v905, %v964
        %v973 = vadd.f32 %v906, %v965
        %v974 = vadd.f32 %v907, %v966
        %v975 = vadd.f32 %v908, %v967
        %977 = vset.pattern.permute.xlu0 0
        %978 = vperm.xlu0 %977, %v320
        %v979 = vpop.permute.xlu0 %978
        %982 = vset.pattern.permute.xlu0 0
        %983 = vperm.xlu0 %982, %v321
        %v984 = vpop.permute.xlu0 %983
        %987 = vset.pattern.permute.xlu0 0
        %988 = vperm.xlu0 %987, %v322
        %v989 = vpop.permute.xlu0 %988
        %992 = vset.pattern.permute.xlu0 0
        %993 = vperm.xlu0 %992, %v323
        %v994 = vpop.permute.xlu0 %993
        %v996 = vadd.f32 %v968, %v979
        %v997 = vadd.f32 %v969, %v979
        %v998 = vadd.f32 %v970, %v984
        %v999 = vadd.f32 %v971, %v984
        %v1000 = vadd.f32 %v972, %v989
        %v1001 = vadd.f32 %v973, %v989
        %v1002 = vadd.f32 %v974, %v994
        %v1003 = vadd.f32 %v975, %v994
        %v1004 = vmul.f32 %v996, 0.70710677
        %v1005 = vmul.f32 %v997, 0.70710677
        %v1006 = vmul.f32 %v998, 0.70710677
        %v1007 = vmul.f32 %v999, 0.70710677
        %v1008 = vmul.f32 %v1000, 0.70710677
        %v1009 = vmul.f32 %v1001, 0.70710677
        %v1010 = vmul.f32 %v1002, 0.70710677
        %v1011 = vmul.f32 %v1003, 0.70710677
        %v1012 = vand.u32 2147483647, %v1004
        %v1013 = vand.u32 2147483647, %v1005
        %v1014 = vand.u32 2147483647, %v1006
        %v1015 = vand.u32 2147483647, %v1007
        %v1016 = vand.u32 2147483647, %v1008
        %v1017 = vand.u32 2147483647, %v1009
        %v1018 = vand.u32 2147483647, %v1010
        %v1019 = vand.u32 2147483647, %v1011
        %v1020 = vmul.f32 %v1012, 0.3275911
        %v1021 = vmul.f32 %v1013, 0.3275911
        %v1022 = vmul.f32 %v1014, 0.3275911
        %v1023 = vmul.f32 %v1015, 0.3275911
        %v1024 = vmul.f32 %v1016, 0.3275911
        %v1025 = vmul.f32 %v1017, 0.3275911
        %v1026 = vmul.f32 %v1018, 0.3275911
        %v1027 = vmul.f32 %v1019, 0.3275911
        %v1028 = vadd.f32 %v1020, 1.0
        %v1029 = vadd.f32 %v1021, 1.0
        %v1030 = vadd.f32 %v1022, 1.0
        %v1031 = vadd.f32 %v1023, 1.0
        %v1032 = vadd.f32 %v1024, 1.0
        %v1033 = vadd.f32 %v1025, 1.0
        %v1034 = vadd.f32 %v1026, 1.0
        %v1035 = vadd.f32 %v1027, 1.0
        %v1036 = vrcp.pop %v1028
        %v1037 = vmul.f32 %v1028, %v1036
        %v1038 = vsub.f32 1.0, %v1037
        %v1039 = vmul.f32 %v1036, %v1038
        %v1040 = vadd.f32 %v1036, %v1039
        %vm1041 = vweird.f32 %v1028
        %vm1042 = vweird.f32 %v1036
        %vm1043 = vmor %vm1041, %vm1042
        %v1044 = vsel %vm1043, %v1036, %v1040
        %v1045 = vand.u32 2147483647, %v1028
        %vm1046 = vcmp.eq.f32.partialorder %v1045, 8.507059e+37
        %v1047 = vand.u32 %v1028, 2147483648
        %v1048 = vor.u32 1.1754944e-38, %v1047
        %v1049 = vsel %vm1046, %v1048, %v1044
        %v1050 = vmul.f32 1.0, %v1049
        %v1051 = vrcp.pop %v1029
        %v1052 = vmul.f32 %v1029, %v1051
        %v1053 = vsub.f32 1.0, %v1052
        %v1054 = vmul.f32 %v1051, %v1053
        %v1055 = vadd.f32 %v1051, %v1054
        %vm1056 = vweird.f32 %v1029
        %vm1057 = vweird.f32 %v1051
        %vm1058 = vmor %vm1056, %vm1057
        %v1059 = vsel %vm1058, %v1051, %v1055
        %v1060 = vand.u32 2147483647, %v1029
        %vm1061 = vcmp.eq.f32.partialorder %v1060, 8.507059e+37
        %v1062 = vand.u32 %v1029, 2147483648
        %v1063 = vor.u32 1.1754944e-38, %v1062
        %v1064 = vsel %vm1061, %v1063, %v1059
        %v1065 = vmul.f32 1.0, %v1064
        %v1066 = vrcp.pop %v1030
        %v1067 = vmul.f32 %v1030, %v1066
        %v1068 = vsub.f32 1.0, %v1067
        %v1069 = vmul.f32 %v1066, %v1068
        %v1070 = vadd.f32 %v1066, %v1069
        %vm1071 = vweird.f32 %v1030
        %vm1072 = vweird.f32 %v1066
        %vm1073 = vmor %vm1071, %vm1072
        %v1074 = vsel %vm1073, %v1066, %v1070
        %v1075 = vand.u32 2147483647, %v1030
        %vm1076 = vcmp.eq.f32.partialorder %v1075, 8.507059e+37
        %v1077 = vand.u32 %v1030, 2147483648
        %v1078 = vor.u32 1.1754944e-38, %v1077
        %v1079 = vsel %vm1076, %v1078, %v1074
        %v1080 = vmul.f32 1.0, %v1079
        %v1081 = vrcp.pop %v1031
        %v1082 = vmul.f32 %v1031, %v1081
        %v1083 = vsub.f32 1.0, %v1082
        %v1084 = vmul.f32 %v1081, %v1083
        %v1085 = vadd.f32 %v1081, %v1084
        %vm1086 = vweird.f32 %v1031
        %vm1087 = vweird.f32 %v1081
        %vm1088 = vmor %vm1086, %vm1087
        %v1089 = vsel %vm1088, %v1081, %v1085
        %v1090 = vand.u32 2147483647, %v1031
        %vm1091 = vcmp.eq.f32.partialorder %v1090, 8.507059e+37
        %v1092 = vand.u32 %v1031, 2147483648
        %v1093 = vor.u32 1.1754944e-38, %v1092
        %v1094 = vsel %vm1091, %v1093, %v1089
        %v1095 = vmul.f32 1.0, %v1094
        %v1096 = vrcp.pop %v1032
        %v1097 = vmul.f32 %v1032, %v1096
        %v1098 = vsub.f32 1.0, %v1097
        %v1099 = vmul.f32 %v1096, %v1098
        %v1100 = vadd.f32 %v1096, %v1099
        %vm1101 = vweird.f32 %v1032
        %vm1102 = vweird.f32 %v1096
        %vm1103 = vmor %vm1101, %vm1102
        %v1104 = vsel %vm1103, %v1096, %v1100
        %v1105 = vand.u32 2147483647, %v1032
        %vm1106 = vcmp.eq.f32.partialorder %v1105, 8.507059e+37
        %v1107 = vand.u32 %v1032, 2147483648
        %v1108 = vor.u32 1.1754944e-38, %v1107
        %v1109 = vsel %vm1106, %v1108, %v1104
        %v1110 = vmul.f32 1.0, %v1109
        %v1111 = vrcp.pop %v1033
        %v1112 = vmul.f32 %v1033, %v1111
        %v1113 = vsub.f32 1.0, %v1112
        %v1114 = vmul.f32 %v1111, %v1113
        %v1115 = vadd.f32 %v1111, %v1114
        %vm1116 = vweird.f32 %v1033
        %vm1117 = vweird.f32 %v1111
        %vm1118 = vmor %vm1116, %vm1117
        %v1119 = vsel %vm1118, %v1111, %v1115
        %v1120 = vand.u32 2147483647, %v1033
        %vm1121 = vcmp.eq.f32.partialorder %v1120, 8.507059e+37
        %v1122 = vand.u32 %v1033, 2147483648
        %v1123 = vor.u32 1.1754944e-38, %v1122
        %v1124 = vsel %vm1121, %v1123, %v1119
        %v1125 = vmul.f32 1.0, %v1124
        %v1126 = vrcp.pop %v1034
        %v1127 = vmul.f32 %v1034, %v1126
        %v1128 = vsub.f32 1.0, %v1127
        %v1129 = vmul.f32 %v1126, %v1128
        %v1130 = vadd.f32 %v1126, %v1129
        %vm1131 = vweird.f32 %v1034
        %vm1132 = vweird.f32 %v1126
        %vm1133 = vmor %vm1131, %vm1132
        %v1134 = vsel %vm1133, %v1126, %v1130
        %v1135 = vand.u32 2147483647, %v1034
        %vm1136 = vcmp.eq.f32.partialorder %v1135, 8.507059e+37
        %v1137 = vand.u32 %v1034, 2147483648
        %v1138 = vor.u32 1.1754944e-38, %v1137
        %v1139 = vsel %vm1136, %v1138, %v1134
        %v1140 = vmul.f32 1.0, %v1139
        %v1141 = vrcp.pop %v1035
        %v1142 = vmul.f32 %v1035, %v1141
        %v1143 = vsub.f32 1.0, %v1142
        %v1144 = vmul.f32 %v1141, %v1143
        %v1145 = vadd.f32 %v1141, %v1144
        %vm1146 = vweird.f32 %v1035
        %vm1147 = vweird.f32 %v1141
        %vm1148 = vmor %vm1146, %vm1147
        %v1149 = vsel %vm1148, %v1141, %v1145
        %v1150 = vand.u32 2147483647, %v1035
        %vm1151 = vcmp.eq.f32.partialorder %v1150, 8.507059e+37
        %v1152 = vand.u32 %v1035, 2147483648
        %v1153 = vor.u32 1.1754944e-38, %v1152
        %v1154 = vsel %vm1151, %v1153, %v1149
        %v1155 = vmul.f32 1.0, %v1154
        %v1156 = vmul.f32 %v1050, 1.0614054
        %v1157 = vmul.f32 %v1065, 1.0614054
        %v1158 = vmul.f32 %v1080, 1.0614054
        %v1159 = vmul.f32 %v1095, 1.0614054
        %v1160 = vmul.f32 %v1110, 1.0614054
        %v1161 = vmul.f32 %v1125, 1.0614054
        %v1162 = vmul.f32 %v1140, 1.0614054
        %v1163 = vmul.f32 %v1155, 1.0614054
        %v1164 = vadd.f32 %v1156, -1.4531521
        %v1165 = vadd.f32 %v1157, -1.4531521
        %v1166 = vadd.f32 %v1158, -1.4531521
        %v1167 = vadd.f32 %v1159, -1.4531521
        %v1168 = vadd.f32 %v1160, -1.4531521
        %v1169 = vadd.f32 %v1161, -1.4531521
        %v1170 = vadd.f32 %v1162, -1.4531521
        %v1171 = vadd.f32 %v1163, -1.4531521
        %v1172 = vmul.f32 %v1050, %v1164
        %v1173 = vmul.f32 %v1065, %v1165
        %v1174 = vmul.f32 %v1080, %v1166
        %v1175 = vmul.f32 %v1095, %v1167
        %v1176 = vmul.f32 %v1110, %v1168
        %v1177 = vmul.f32 %v1125, %v1169
        %v1178 = vmul.f32 %v1140, %v1170
        %v1179 = vmul.f32 %v1155, %v1171
        %v1180 = vadd.f32 %v1172, 1.4214138
        %v1181 = vadd.f32 %v1173, 1.4214138
        %v1182 = vadd.f32 %v1174, 1.4214138
        %v1183 = vadd.f32 %v1175, 1.4214138
        %v1184 = vadd.f32 %v1176, 1.4214138
        %v1185 = vadd.f32 %v1177, 1.4214138
        %v1186 = vadd.f32 %v1178, 1.4214138
        %v1187 = vadd.f32 %v1179, 1.4214138
        %v1188 = vmul.f32 %v1050, %v1180
        %v1189 = vmul.f32 %v1065, %v1181
        %v1190 = vmul.f32 %v1080, %v1182
        %v1191 = vmul.f32 %v1095, %v1183
        %v1192 = vmul.f32 %v1110, %v1184
        %v1193 = vmul.f32 %v1125, %v1185
        %v1194 = vmul.f32 %v1140, %v1186
        %v1195 = vmul.f32 %v1155, %v1187
        %v1196 = vadd.f32 %v1188, -0.28449672
        %v1197 = vadd.f32 %v1189, -0.28449672
        %v1198 = vadd.f32 %v1190, -0.28449672
        %v1199 = vadd.f32 %v1191, -0.28449672
        %v1200 = vadd.f32 %v1192, -0.28449672
        %v1201 = vadd.f32 %v1193, -0.28449672
        %v1202 = vadd.f32 %v1194, -0.28449672
        %v1203 = vadd.f32 %v1195, -0.28449672
        %v1204 = vmul.f32 %v1050, %v1196
        %v1205 = vmul.f32 %v1065, %v1197
        %v1206 = vmul.f32 %v1080, %v1198
        %v1207 = vmul.f32 %v1095, %v1199
        %v1208 = vmul.f32 %v1110, %v1200
        %v1209 = vmul.f32 %v1125, %v1201
        %v1210 = vmul.f32 %v1140, %v1202
        %v1211 = vmul.f32 %v1155, %v1203
        %v1212 = vadd.f32 %v1204, 0.2548296
        %v1213 = vadd.f32 %v1205, 0.2548296
        %v1214 = vadd.f32 %v1206, 0.2548296
        %v1215 = vadd.f32 %v1207, 0.2548296
        %v1216 = vadd.f32 %v1208, 0.2548296
        %v1217 = vadd.f32 %v1209, 0.2548296
        %v1218 = vadd.f32 %v1210, 0.2548296
        %v1219 = vadd.f32 %v1211, 0.2548296
        %v1220 = vmul.f32 %v1050, %v1212
        %v1221 = vmul.f32 %v1065, %v1213
        %v1222 = vmul.f32 %v1080, %v1214
        %v1223 = vmul.f32 %v1095, %v1215
        %v1224 = vmul.f32 %v1110, %v1216
        %v1225 = vmul.f32 %v1125, %v1217
        %v1226 = vmul.f32 %v1140, %v1218
        %v1227 = vmul.f32 %v1155, %v1219
        %v1228 = vsub.f32 0.0, %v1012
        %v1229 = vsub.f32 0.0, %v1013
        %v1230 = vsub.f32 0.0, %v1014
        %v1231 = vsub.f32 0.0, %v1015
        %v1232 = vsub.f32 0.0, %v1016
        %v1233 = vsub.f32 0.0, %v1017
        %v1234 = vsub.f32 0.0, %v1018
        %v1235 = vsub.f32 0.0, %v1019
        %v1236 = vmul.f32 %v1228, %v1012
        %v1237 = vmul.f32 %v1229, %v1013
        %v1238 = vmul.f32 %v1230, %v1014
        %v1239 = vmul.f32 %v1231, %v1015
        %v1240 = vmul.f32 %v1232, %v1016
        %v1241 = vmul.f32 %v1233, %v1017
        %v1242 = vmul.f32 %v1234, %v1018
        %v1243 = vmul.f32 %v1235, %v1019
        %v1244 = vmul.f32 %v1236, 1.442695
        %v1245 = vpow.pop %v1244
        %v1246 = vmul.f32 %v1237, 1.442695
        %v1247 = vpow.pop %v1246
        %v1248 = vmul.f32 %v1238, 1.442695
        %v1249 = vpow.pop %v1248
        %v1250 = vmul.f32 %v1239, 1.442695
        %v1251 = vpow.pop %v1250
        %v1252 = vmul.f32 %v1240, 1.442695
        %v1253 = vpow.pop %v1252
        %v1254 = vmul.f32 %v1241, 1.442695
        %v1255 = vpow.pop %v1254
        %v1256 = vmul.f32 %v1242, 1.442695
        %v1257 = vpow.pop %v1256
        %v1258 = vmul.f32 %v1243, 1.442695
        %v1259 = vpow.pop %v1258
        %v1260 = vmul.f32 %v1220, %v1245
        %v1261 = vmul.f32 %v1221, %v1247
        %v1262 = vmul.f32 %v1222, %v1249
        %v1263 = vmul.f32 %v1223, %v1251
        %v1264 = vmul.f32 %v1224, %v1253
        %v1265 = vmul.f32 %v1225, %v1255
        %v1266 = vmul.f32 %v1226, %v1257
        %v1267 = vmul.f32 %v1227, %v1259
        %v1268 = vsub.f32 1.0, %v1260
        %v1269 = vsub.f32 1.0, %v1261
        %v1270 = vsub.f32 1.0, %v1262
        %v1271 = vsub.f32 1.0, %v1263
        %v1272 = vsub.f32 1.0, %v1264
        %v1273 = vsub.f32 1.0, %v1265
        %v1274 = vsub.f32 1.0, %v1266
        %v1275 = vsub.f32 1.0, %v1267
        %vm1276 = vcmp.lt.f32.partialorder %v1004, 0.0
        %vm1277 = vcmp.lt.f32.partialorder %v1005, 0.0
        %vm1278 = vcmp.lt.f32.partialorder %v1006, 0.0
        %vm1279 = vcmp.lt.f32.partialorder %v1007, 0.0
        %vm1280 = vcmp.lt.f32.partialorder %v1008, 0.0
        %vm1281 = vcmp.lt.f32.partialorder %v1009, 0.0
        %vm1282 = vcmp.lt.f32.partialorder %v1010, 0.0
        %vm1283 = vcmp.lt.f32.partialorder %v1011, 0.0
        %v1284 = vsub.f32 0.0, %v1268
        %v1285 = vsub.f32 0.0, %v1269
        %v1286 = vsub.f32 0.0, %v1270
        %v1287 = vsub.f32 0.0, %v1271
        %v1288 = vsub.f32 0.0, %v1272
        %v1289 = vsub.f32 0.0, %v1273
        %v1290 = vsub.f32 0.0, %v1274
        %v1291 = vsub.f32 0.0, %v1275
        %v1292 = vsel %vm1276, %v1284, %v1268
        %v1293 = vsel %vm1277, %v1285, %v1269
        %v1294 = vsel %vm1278, %v1286, %v1270
        %v1295 = vsel %vm1279, %v1287, %v1271
        %v1296 = vsel %vm1280, %v1288, %v1272
        %v1297 = vsel %vm1281, %v1289, %v1273
        %v1298 = vsel %vm1282, %v1290, %v1274
        %v1299 = vsel %vm1283, %v1291, %v1275
        %v1300 = vmul.f32 %v996, 0.5
        %v1301 = vmul.f32 %v997, 0.5
        %v1302 = vmul.f32 %v998, 0.5
        %v1303 = vmul.f32 %v999, 0.5
        %v1304 = vmul.f32 %v1000, 0.5
        %v1305 = vmul.f32 %v1001, 0.5
        %v1306 = vmul.f32 %v1002, 0.5
        %v1307 = vmul.f32 %v1003, 0.5
        %v1308 = vadd.f32 %v1292, 1.0
        %v1309 = vadd.f32 %v1293, 1.0
        %v1310 = vadd.f32 %v1294, 1.0
        %v1311 = vadd.f32 %v1295, 1.0
        %v1312 = vadd.f32 %v1296, 1.0
        %v1313 = vadd.f32 %v1297, 1.0
        %v1314 = vadd.f32 %v1298, 1.0
        %v1315 = vadd.f32 %v1299, 1.0
        %v1316 = vmul.f32 %v1300, %v1308
        %v1317 = vmul.f32 %v1301, %v1309
        %v1318 = vmul.f32 %v1302, %v1310
        %v1319 = vmul.f32 %v1303, %v1311
        %v1320 = vmul.f32 %v1304, %v1312
        %v1321 = vmul.f32 %v1305, %v1313
        %v1322 = vmul.f32 %v1306, %v1314
        %v1323 = vmul.f32 %v1307, %v1315
        %v1324 = vpack.c.bf16 %v1318, %v1316
        %v1325 = vpack.c.bf16 %v1319, %v1317
        %v1326 = vpack.c.bf16 %v1322, %v1320
        %v1327 = vpack.c.bf16 %v1323, %v1321
        %1329 = vset.pattern.permute.xlu0 0
        %1330 = vperm.xlu0 %1329, %v324
        %v1331 = vpop.permute.xlu0 %1330
        %vm1333 = vcmask 261120
        %v1335 = vsel %vm1333, %v311, 0
        %1337 = vmatpush.bf16.msra.mxu0 0
        %1338 = vmatpush.bf16.msra.mxu0 0
        %1339 = vmatpush.bf16.msra.mxu0 0
        %1340 = vmatpush.bf16.msra.mxu0 0
        %1341 = vmatpush.bf16.msra.mxu0 0
        %1342 = vmatpush.bf16.msra.mxu0 0
        %1343 = vmatpush.bf16.msra.mxu0 %v1326
        %1344 = vmatpush.bf16.msra.mxu0 %v1324
        %1345 = vmatmul.bf16.gmra.mxu0 %v1335
        %v1346 = vpop.f32.mrf.mxu0
        %v1347 = vadd.f32 %v1331, %v1346
        %v1348 = vpop.f32.mrf.mxu0
        %1349 = vdwg.mxu0
        %1350 = vmatpush.bf16.msra.mxu0 0
        %1351 = vmatpush.bf16.msra.mxu0 0
        %1352 = vmatpush.bf16.msra.mxu0 0
        %1353 = vmatpush.bf16.msra.mxu0 0
        %1354 = vmatpush.bf16.msra.mxu0 0
        %1355 = vmatpush.bf16.msra.mxu0 0
        %1356 = vmatpush.bf16.msra.mxu0 %v1327
        %1357 = vmatpush.bf16.msra.mxu0 %v1325
        %1358 = vmatmul.bf16.gmra.mxu0 %v1335
        %v1359 = vpop.f32.mrf.mxu0
        %v1360 = vadd.f32 %v1331, %v1359
        %v1361 = vpop.f32.mrf.mxu0
        %1362 = vdwg.mxu0
        %v1365 = vrot.slane %v1360, 4
        %vm1366 = vcmask 1043456
        %v1367 = vsel %vm1366, %v1347, %v1365
        %1369 = vst [vmem:[%s298] sm:$0xff] %v1367
        %s1370 = sand.u32 %s203, 1
        %s1371 = scalar_lea.sflag [#allocation3], %s1370
        %s1372 = sand.u32 %s203, 1
        %s1373 = smul.addr %s1372, 8
        %s1374 = scalar_lea.vmem [#allocation2], %s1373
        // Predicated region
        $region53: #{tpu_custom_call.1} parent=51 // pred_check
          %p1375 = pneg %p213
        $region54: #{tpu_custom_call.1} parent=51 // pred_check_branch
          %1377 = sbr.rel (%p1375) target = $region56
        $region55: #{tpu_custom_call.1} parent=51 // pred_region
          %1379 = vsyncadd %s1371, 0
          %s1380 = smul.addr %s22, 2
          %s1381 = smul.addr %s1380, 4
          %s1382 = scalar_lea.hbm %s8, %s1381
          %s1384 = sshll.u32 %s1374, 4
          %s1385 = int_to_ptr.vmem [resolvable:$true] %s1384
          %s1386 = sshll.u32 %s1382, 4
          %s1387 = int_to_ptr.hbm [resolvable:$true] %s1386
          %1389 = dma.vmem_to_hbm [thread:$0]  %s1385, 128, %s1387, %s1371
        $region56: #{tpu_custom_call.1} parent=51 // pred_fallthru
          _
      $region52: #{tpu_custom_call.1} parent=5 // pred_fallthru
        _
      %p1390 = scmp.le.s32.totalorder 2, %s17
      // Predicated region
      $region57: #{tpu_custom_call.1} parent=5 // pred_check
        %p1391 = pneg %p1390
      $region58: #{tpu_custom_call.1} parent=5 // pred_check_branch
        %1393 = sbr.rel (%p1391) target = $region60
      $region59: #{tpu_custom_call.1} parent=5 // pred_region
        %s1394 = ssub.s32 %s17, 2
        // Predicated region
        $region61: #{tpu_custom_call.1} parent=59 // pred_check
          %p1395 = pneg %p219
        $region62: #{tpu_custom_call.1} parent=59 // pred_check_branch
          %1397 = sbr.rel (%p1395) target = $region64
        $region63: #{tpu_custom_call.1} parent=59 // pred_region
          %s1398 = sand.u32 %s204, 1
          %s1399 = scalar_lea.sflag [#allocation3], %s1398
          %s1400 = sand.u32 %s204, 1
          %s1401 = smul.addr %s1400, 8
          %s1402 = scalar_lea.vmem [#allocation2], %s1401
          %1404 = dma.done %s1399, 128
        $region64: #{tpu_custom_call.1} parent=59 // pred_fallthru
          _
      $region60: #{tpu_custom_call.1} parent=5 // pred_fallthru
        _
    $region6: #{tpu_custom_call.1} parent=1 // loop_footer
      %s21 = sadd.s32 1, %s17
    $region7: #{tpu_custom_call.1} parent=1 // loop_footer_branch
      %16 = sbr.rel target = $region3
    $region8: #{tpu_custom_call.1} parent=1 // loop_exit
      _
    %1405 = vsyncpa [#allocation3], 1
    %s1406 = scalar_lea.sflag [#allocation3], 1
    %1407 = vsyncpa %s1406, 1

</llo_original>
